<compile_context>
chip_gen: v7x
topology: tpu7x:2x2x1
jax: 0.10.0
libtpu: 0.0.40
codegen_flags: <defaults>
</compile_context>

<pallas_src>
import jax
import jax.numpy as jnp
from jax.experimental import pallas as pl
from jax.experimental.pallas import tpu as pltpu

# Static model configuration (matches the PyTorch module).
CIN, C0, C1, C2 = 3, 16, 32, 1
CIN_PAD = 8                  # zero-pad Cin 3 -> 8
S_IN = 8                     # input spatial extent (8x8x8)
K_DIM = S_IN * CIN_PAD       # matmul reduction dim: (w, cin_pad) = 64
N_WIDE = 8 * 512             # all output columns (A, B, w', C) = 4096
A_PER_STEP = 4               # D-offset groups handled per grid step (grid = 2)


def _fused_conv_stack(x_flat, w_wide, b_wide, *, n):
    """x_flat: (n*64, 64) bf16, rows=(n,d,h), cols=(w,cin_pad).
    Returns (n*8, 8, 8, 512) f32 laid out as (n*d, A, h, (B,w,C))."""
    m = x_flat.shape[0]               # n * 64
    nd8 = n * S_IN                    # n * 8

    def kernel(x_ref, w_ref, b_ref, o_ref):
        # single MXU matmul: (n*64, 64) @ (64, 2048) -> f32
        y = jnp.dot(x_ref[...], w_ref[...], preferred_element_type=jnp.float32)
        y = y + b_ref[...]
        # scatter the 4 D-offset slices straight into final-layout blocks
        for a in range(A_PER_STEP):
            o_ref[:, a, :, :] = (
                y[:, a * 512:(a + 1) * 512]
                .reshape(nd8, S_IN, 512)
                .astype(o_ref.dtype))

    return pl.pallas_call(
        kernel,
        out_shape=jax.ShapeDtypeStruct((nd8, S_IN, S_IN, 512), jnp.float32),
        grid=(2,),
        in_specs=[
            pl.BlockSpec((m, K_DIM), lambda i: (0, 0)),                 # x (invariant)
            pl.BlockSpec((K_DIM, A_PER_STEP * 512), lambda i: (0, i)),  # weight slice
            pl.BlockSpec((1, A_PER_STEP * 512), lambda i: (0, i)),      # bias slice
        ],
        out_specs=pl.BlockSpec((nd8, A_PER_STEP, S_IN, 512),
                               lambda i: (0, i, 0, 0)),
        compiler_params=pltpu.CompilerParams(
            dimension_semantics=("parallel",),
        ),
    )(x_flat, w_wide, b_wide)


def prepare_fused_params(params):
    """One-time offline weight folding (all in f32; single bf16 cast at the end).
    params = ((w0,b0),(w1,b1),(w2,b2)) with weights in PyTorch ConvTranspose3d
    layout (Cin, Cout, 2, 2, 2)."""
    (w0, b0), (w1, b1), (w2, b2) = params

    def flat(w):  # (Cin, Cout, kd, kh, kw) -> (Cin, 8*Cout), col = k*Cout + co
        cin, cout = w.shape[0], w.shape[1]
        return jnp.transpose(w, (0, 2, 3, 4, 1)).reshape(cin, 8 * cout)

    k0m = flat(w0)                                             # (3, 128)
    k1m = jnp.kron(jnp.eye(8, dtype=jnp.float32), flat(w1))    # (128, 2048)
    k2m = jnp.kron(jnp.eye(64, dtype=jnp.float32), flat(w2))   # (2048, 512)

    # Compose the purely-affine stack: y = x @ W_tot + b_tot   (cols = (k0,k1,k2))
    w_tot = k0m @ k1m @ k2m                                    # (3, 512)
    b_tot = (jnp.tile(b0, 8)[None, :] @ k1m @ k2m
             + jnp.tile(b1, 64)[None, :] @ k2m
             + jnp.tile(b2, 512)[None, :])                     # (1, 512)

    # Permute columns from (k0,k1,k2) slot order to (A,B,C) spatial-offset order.
    newcol = jnp.arange(512)
    A, B, C = newcol // 64, (newcol // 8) % 8, newcol % 8
    k0 = 4 * (A // 4) + 2 * (B // 4) + (C // 4)
    k1 = 4 * ((A // 2) % 2) + 2 * ((B // 2) % 2) + ((C // 2) % 2)
    k2 = 4 * (A % 2) + 2 * (B % 2) + (C % 2)
    oldcol = k0 * 64 + k1 * 8 + k2
    w_tot = w_tot[:, oldcol]                                   # (3, 512) cols=(A,B,C)
    b_tot = b_tot[0, oldcol]                                   # (512,)

    # Pad Cin 3 -> 8, then expand to the w-block-diagonal wide matrix:
    #   W_wide[(w, cin), (A, B, w', C)] = W_tot[cin, (A,B,C)] * (w == w')
    w_tot = jnp.pad(w_tot, ((0, CIN_PAD - CIN), (0, 0)))       # (8, 512)
    wt4 = w_tot.reshape(CIN_PAD, 8, 8, 8)                      # (cin, A, B, C)
    eye_w = jnp.eye(8, dtype=jnp.float32)
    w_wide = jnp.einsum("wv,cabk->wcabvk", eye_w, wt4)         # (w,cin,A,B,w',C)
    w_wide = w_wide.reshape(K_DIM, N_WIDE)                     # (64, 4096)

    b_wide = jnp.broadcast_to(b_tot.reshape(8, 8, 1, 8),
                              (8, 8, 8, 8)).reshape(1, N_WIDE)  # (1, 4096)

    return dict(w=w_wide.astype(jnp.bfloat16), b=b_wide.astype(jnp.float32))


def model_forward(x_ncdhw, fused):
    n = x_ncdhw.shape[0]
    assert x_ncdhw.shape[1:] == (CIN, S_IN, S_IN, S_IN)
    # NCDHW -> (n, d, h, w, cin); pad cin; rows = (n,d,h), K = (w, cin_pad)
    xt = jnp.transpose(x_ncdhw, (0, 2, 3, 4, 1))
    xt = jnp.pad(xt, ((0, 0), (0, 0), (0, 0), (0, 0), (0, CIN_PAD - CIN)))
    x_flat = xt.reshape(n * S_IN * S_IN, K_DIM).astype(jnp.bfloat16)

    out = _fused_conv_stack(x_flat, fused["w"], fused["b"], n=n)
    # out flat order per batch = (d, A, h, B, w, C) == (D_out, H_out, W_out):
    # the reshape below is a pure metadata op -- no transpose needed.
    return out.reshape(n, C2, 8 * S_IN, 8 * S_IN, 8 * S_IN)


def init_conv_transpose_params(key, cin, cout, k=2):
    kw, kb = jax.random.split(key)
    bound = 1.0 / ((cin * k * k * k) ** 0.5)
    w = jax.random.uniform(kw, (cin, cout, k, k, k), jnp.float32, -bound, bound)
    b = jax.random.uniform(kb, (cout,), jnp.float32, -bound, bound)
    return w, b


def _ref_forward(x_ncdhw, params):
    # Pure-JAX float32 reference: per-layer decomposition of ConvTranspose3d with
    # kernel == stride == 2, padding == 0 (per-voxel matmul + 2x upsample scatter).
    v = jnp.transpose(x_ncdhw, (0, 2, 3, 4, 1))
    for w, b in params:
        n, d, h, ws, cin = v.shape
        cout = w.shape[1]
        w_mat = jnp.transpose(w, (0, 2, 3, 4, 1)).reshape(cin, 8 * cout)
        bias_mat = jnp.broadcast_to(b, (8, cout)).reshape(1, 8 * cout)
        out = v.reshape(-1, cin) @ w_mat + bias_mat
        out = out.reshape(n, d, h, ws, 2, 2, 2, cout)
        out = jnp.transpose(out, (0, 1, 4, 2, 5, 3, 6, 7))
        v = out.reshape(n, 2 * d, 2 * h, 2 * ws, cout)
    return jnp.transpose(v, (0, 4, 1, 2, 3))


if __name__ == "__main__":
    key = jax.random.PRNGKey(0)
    kx, kp0, kp1, kp2 = jax.random.split(key, 4)

    x = jax.random.normal(kx, (1, CIN, S_IN, S_IN, S_IN), jnp.float32)
    params = (
        init_conv_transpose_params(kp0, CIN, C0),
        init_conv_transpose_params(kp1, C0, C1),
        init_conv_transpose_params(kp2, C1, C2),
    )

    fused = prepare_fused_params(params)      # one-time offline weight folding
    fwd = jax.jit(model_forward)

    out = jax.block_until_ready(fwd(x, fused))
    assert out.shape == (1, C2, 64, 64, 64), out.shape

    ref = jax.block_until_ready(_ref_forward(x, params))
    # Only precision loss is the single bf16 cast of x and the folded weight
    # (composition itself is f32) -> error ~1e-3; keep a wide margin.
    assert jnp.allclose(out, ref, atol=2e-2, rtol=2e-2), float(
        jnp.max(jnp.abs(out - ref)))

    print("KERNEL_OK")
</pallas_src>

<mosaic_0001>
module attributes {stable_mosaic.version = 11 : i64} {
  func.func @kernel(%arg0: i32, %arg1: memref<64x64xbf16, #tpu.memory_space<vmem>>, %arg2: memref<64x2048xbf16, #tpu.memory_space<vmem>>, %arg3: memref<1x2048xf32, #tpu.memory_space<vmem>>, %arg4: memref<8x4x8x512xf32, #tpu.memory_space<vmem>>) attributes {dimension_semantics = [#tpu.dimension_semantics<parallel>], iteration_bounds = array<i64: 2>, scalar_prefetch = 0 : i64, scratch_operands = 0 : i64, tpu.core_type = #tpu.core_type<tc>, window_params = [{pipeline_mode = #tpu.pipeline_mode<synchronous>, transform_indices = @transform_0, window_bounds = array<i64: 64, 64>}, {transform_indices = @transform_1, window_bounds = array<i64: 64, 2048>}, {transform_indices = @transform_2, window_bounds = array<i64: 1, 2048>}, {transform_indices = @transform_3, window_bounds = array<i64: 8, 4, 8, 512>}]} {
    %c0 = arith.constant 0 : index
    %c0_0 = arith.constant 0 : index
    %0 = vector.load %arg1[%c0, %c0_0] : memref<64x64xbf16, #tpu.memory_space<vmem>>, vector<64x64xbf16>
    %c0_1 = arith.constant 0 : index
    %c0_2 = arith.constant 0 : index
    %1 = vector.load %arg2[%c0_1, %c0_2] : memref<64x2048xbf16, #tpu.memory_space<vmem>>, vector<64x2048xbf16>
    %cst = arith.constant dense<0.000000e+00> : vector<64x2048xf32>
    %2 = tpu.matmul %0, %1, %cst {dimension_numbers = #tpu.dot_dimension_numbers<[1], [0], [0], [1], [0, 0, 1, 1], [], []>} : vector<64x64xbf16>, vector<64x2048xbf16>, vector<64x2048xf32> -> vector<64x2048xf32>
    %c0_3 = arith.constant 0 : index
    %c0_4 = arith.constant 0 : index
    %3 = vector.load %arg3[%c0_3, %c0_4] : memref<1x2048xf32, #tpu.memory_space<vmem>>, vector<1x2048xf32>
    %4 = vector.broadcast %3 : vector<1x2048xf32> to vector<64x2048xf32>
    %5 = arith.addf %2, %4 : vector<64x2048xf32>
    %6 = vector.extract_strided_slice %5 {offsets = [0, 0], sizes = [64, 512], strides = [1, 1]} : vector<64x2048xf32> to vector<64x512xf32>
    %7 = vector.shape_cast %6 : vector<64x512xf32> to vector<8x8x512xf32>
    %c0_5 = arith.constant 0 : index
    %c0_6 = arith.constant 0 : index
    %c0_7 = arith.constant 0 : index
    %c0_8 = arith.constant 0 : index
    %8 = vector.load %arg4[%c0_5, %c0_6, %c0_7, %c0_8] : memref<8x4x8x512xf32, #tpu.memory_space<vmem>>, vector<8x1x8x512xf32>
    %9 = vector.shape_cast %8 : vector<8x1x8x512xf32> to vector<8x8x512xf32>
    %10 = vector.shape_cast %7 : vector<8x8x512xf32> to vector<8x1x8x512xf32>
    tpu.vector_store %arg4[%c0_5, %c0_6, %c0_7, %c0_8], %10 {strides = array<i32>} : memref<8x4x8x512xf32, #tpu.memory_space<vmem>>, vector<8x1x8x512xf32>,
    %11 = vector.extract_strided_slice %5 {offsets = [0, 512], sizes = [64, 512], strides = [1, 1]} : vector<64x2048xf32> to vector<64x512xf32>
    %12 = vector.shape_cast %11 : vector<64x512xf32> to vector<8x8x512xf32>
    %c0_9 = arith.constant 0 : index
    %c1 = arith.constant 1 : index
    %c0_10 = arith.constant 0 : index
    %c0_11 = arith.constant 0 : index
    %13 = vector.load %arg4[%c0_9, %c1, %c0_10, %c0_11] : memref<8x4x8x512xf32, #tpu.memory_space<vmem>>, vector<8x1x8x512xf32>
    %14 = vector.shape_cast %13 : vector<8x1x8x512xf32> to vector<8x8x512xf32>
    %15 = vector.shape_cast %12 : vector<8x8x512xf32> to vector<8x1x8x512xf32>
    tpu.vector_store %arg4[%c0_9, %c1, %c0_10, %c0_11], %15 {strides = array<i32>} : memref<8x4x8x512xf32, #tpu.memory_space<vmem>>, vector<8x1x8x512xf32>,
    %16 = vector.extract_strided_slice %5 {offsets = [0, 1024], sizes = [64, 512], strides = [1, 1]} : vector<64x2048xf32> to vector<64x512xf32>
    %17 = vector.shape_cast %16 : vector<64x512xf32> to vector<8x8x512xf32>
    %c0_12 = arith.constant 0 : index
    %c2 = arith.constant 2 : index
    %c0_13 = arith.constant 0 : index
    %c0_14 = arith.constant 0 : index
    %18 = vector.load %arg4[%c0_12, %c2, %c0_13, %c0_14] : memref<8x4x8x512xf32, #tpu.memory_space<vmem>>, vector<8x1x8x512xf32>
    %19 = vector.shape_cast %18 : vector<8x1x8x512xf32> to vector<8x8x512xf32>
    %20 = vector.shape_cast %17 : vector<8x8x512xf32> to vector<8x1x8x512xf32>
    tpu.vector_store %arg4[%c0_12, %c2, %c0_13, %c0_14], %20 {strides = array<i32>} : memref<8x4x8x512xf32, #tpu.memory_space<vmem>>, vector<8x1x8x512xf32>,
    %21 = vector.extract_strided_slice %5 {offsets = [0, 1536], sizes = [64, 512], strides = [1, 1]} : vector<64x2048xf32> to vector<64x512xf32>
    %22 = vector.shape_cast %21 : vector<64x512xf32> to vector<8x8x512xf32>
    %c0_15 = arith.constant 0 : index
    %c3 = arith.constant 3 : index
    %c0_16 = arith.constant 0 : index
    %c0_17 = arith.constant 0 : index
    %23 = vector.load %arg4[%c0_15, %c3, %c0_16, %c0_17] : memref<8x4x8x512xf32, #tpu.memory_space<vmem>>, vector<8x1x8x512xf32>
    %24 = vector.shape_cast %23 : vector<8x1x8x512xf32> to vector<8x8x512xf32>
    %25 = vector.shape_cast %22 : vector<8x8x512xf32> to vector<8x1x8x512xf32>
    tpu.vector_store %arg4[%c0_15, %c3, %c0_16, %c0_17], %25 {strides = array<i32>} : memref<8x4x8x512xf32, #tpu.memory_space<vmem>>, vector<8x1x8x512xf32>,
    return
  }
  func.func @transform_0(%arg0: i32) -> (i32, i32) {
    %c0_i32 = arith.constant 0 : i32
    %c0_i32_0 = arith.constant 0 : i32
    %c0_i32_1 = arith.constant 0 : i32
    return %c0_i32, %c0_i32_0 : i32, i32
  }
  func.func @transform_1(%arg0: i32) -> (i32, i32) {
    %c0_i32 = arith.constant 0 : i32
    %c0_i32_0 = arith.constant 0 : i32
    return %c0_i32, %arg0 : i32, i32
  }
  func.func @transform_2(%arg0: i32) -> (i32, i32) {
    %c0_i32 = arith.constant 0 : i32
    %c0_i32_0 = arith.constant 0 : i32
    return %c0_i32, %arg0 : i32, i32
  }
  func.func @transform_3(%arg0: i32) -> (i32, i32, i32, i32) {
    %c0_i32 = arith.constant 0 : i32
    %c0_i32_0 = arith.constant 0 : i32
    %c0_i32_1 = arith.constant 0 : i32
    %c0_i32_2 = arith.constant 0 : i32
    return %c0_i32, %arg0, %c0_i32_0, %c0_i32_1 : i32, i32, i32, i32
  }
}

</mosaic_0001>

<llo_original>
// kernel: model_forward.1
$region0: #{model_forward.1}
  #allocation0 [shape = 'u32[]', space=smem, size = 0x4, offset = 0x4, fixed_abs, tag = 'smem constant byte address 0x4 - core index']
  #allocation1 [shape = 'u32[144,128]{1,0:T(1,128)}', space=vmem, size = 0x12000, scoped, tag = 'internal scratch']
  %s0 = inlined_call_operand.vmem [shape: bf16[64,64], index: 0, kind: input, shape index: {}]
  %s1 = inlined_call_operand.hbm [shape: bf16[64,4096], index: 1, kind: input, shape index: {}]
  %s2 = inlined_call_operand.hbm [shape: f32[1,4096], index: 2, kind: input, shape index: {}]
  %s3 = inlined_call_operand.vmem [shape: f32[8,8,8,512], index: 3, kind: output, shape index: {}]
  %s4 = sld [smem:[#allocation0]]
  $region72: #{model_forward.1} parent=0
    _
  %s6 = ssub.s32 1, %s4
  %s7 = scalar_select 0, %s6, %s4
  $region1: #{model_forward.1} parent=0
    #allocation2 [shape = 'u8[524288]{0}', space=vmem, size = 0x80000, scoped, tag = 'input window, operand 1']
    #allocation3 [shape = 's32[2]{0}', space=sflag, size = 0x8, scoped, tag = 'scoped memory for model_forward.1']
    #allocation4 [shape = 'u8[16384]{0}', space=vmem, size = 0x4000, scoped, tag = 'input window, operand 2']
    #allocation5 [shape = 's32[2]{0}', space=sflag, size = 0x8, scoped, tag = 'scoped memory for model_forward.1']
    #allocation6 [shape = 'u8[1048576]{0}', space=vmem, size = 0x100000, scoped, tag = 'output window, operand 0']
    %8 = vsyncpa [#allocation3], 0
    %s9 = scalar_lea.sflag [#allocation3], 1
    %10 = vsyncpa %s9, 0
    %11 = vsyncpa [#allocation5], 0
    %s12 = scalar_lea.sflag [#allocation5], 1
    %13 = vsyncpa %s12, 0
    loop: start=0, step=1, limit=4
    $region2: #{model_forward.1} parent=1 // loop_pre_header
      _
    $region3: #{model_forward.1} parent=1 // loop_header
      %s15 = sphi 0, %s19
      %p16 = scmp.ge.s32.totalorder %s15, 4
      %s23 = sphi 0, %s23
      %s25 = sphi 0, %s23
      %s26 = sphi 0, %s25
      %s40 = sphi 0, %s26
      %s46 = sphi 0, %s48
      %s49 = sphi 0, %s46
      %s50 = sphi 0, %s49
      %s66 = sphi 0, %s50
      %s72 = sphi 0, %s74
      %s75 = sphi 0, %s72
      %s76 = sphi 0, %s75
      %s92 = sphi 0, %s76
      %s98 = sphi 0, %s100
      %s101 = sphi 0, %s98
      %s102 = sphi 0, %s101
      %s118 = sphi 0, %s102
    $region4: #{model_forward.1} parent=1 // loop_header_branch
      %18 = sbr.rel (%p16) target = $region8
    $region5: #{model_forward.1} parent=1 // loop_body
      %s20 = ssub.s32 %s15, 1
      %s21 = ssub.s32 %s15, 2
      %s22 = sadd.s32 %s15, 1
      %s24 = sadd.s32 %s23, 1
      %p27 = scmp.eq.s32.totalorder %s15, 1
      %p28 = scmp.ne.s32.totalorder %s23, %s25
      %p29 = scmp.eq.s32.totalorder %s15, 0
      %p30 = por %p28, %p29
      %p31 = scmp.ne.s32.totalorder %s23, %s25
      %p32 = scmp.eq.s32.totalorder %s20, 1
      %p33 = por %p31, %p32
      %p34 = scmp.ne.s32.totalorder %s25, %s26
      %p35 = scmp.eq.s32.totalorder %s20, 0
      %p36 = por %p34, %p35
      %p37 = scmp.ne.s32.totalorder %s25, %s26
      %p38 = scmp.eq.s32.totalorder %s21, 1
      %p39 = por %p37, %p38
      %p41 = scmp.ne.s32.totalorder %s26, %s40
      %p42 = scmp.eq.s32.totalorder %s21, 0
      %p43 = por %p41, %p42
      %s44 = ssub.s32 %s15, %s22
      %p45 = scmp.eq.s32.totalorder %s44, 0
      %s47 = sadd.s32 %s46, 1
      %s48 = scalar_select %p45, %s46, %s47
      %p51 = pneg %p45
      %p52 = scmp.eq.s32.totalorder %s15, 1
      %p53 = por %p51, %p52
      %p54 = scmp.ne.s32.totalorder %s46, %s49
      %p55 = scmp.eq.s32.totalorder %s15, 0
      %p56 = por %p54, %p55
      %p57 = scmp.ne.s32.totalorder %s46, %s49
      %p58 = scmp.eq.s32.totalorder %s20, 1
      %p59 = por %p57, %p58
      %p60 = scmp.ne.s32.totalorder %s49, %s50
      %p61 = scmp.eq.s32.totalorder %s20, 0
      %p62 = por %p60, %p61
      %p63 = scmp.ne.s32.totalorder %s49, %s50
      %p64 = scmp.eq.s32.totalorder %s21, 1
      %p65 = por %p63, %p64
      %p67 = scmp.ne.s32.totalorder %s50, %s66
      %p68 = scmp.eq.s32.totalorder %s21, 0
      %p69 = por %p67, %p68
      %s70 = ssub.s32 %s15, %s22
      %p71 = scmp.eq.s32.totalorder %s70, 0
      %s73 = sadd.s32 %s72, 1
      %s74 = scalar_select %p71, %s72, %s73
      %p77 = pneg %p71
      %p78 = scmp.eq.s32.totalorder %s15, 1
      %p79 = por %p77, %p78
      %p80 = scmp.ne.s32.totalorder %s72, %s75
      %p81 = scmp.eq.s32.totalorder %s15, 0
      %p82 = por %p80, %p81
      %p83 = scmp.ne.s32.totalorder %s72, %s75
      %p84 = scmp.eq.s32.totalorder %s20, 1
      %p85 = por %p83, %p84
      %p86 = scmp.ne.s32.totalorder %s75, %s76
      %p87 = scmp.eq.s32.totalorder %s20, 0
      %p88 = por %p86, %p87
      %p89 = scmp.ne.s32.totalorder %s75, %s76
      %p90 = scmp.eq.s32.totalorder %s21, 1
      %p91 = por %p89, %p90
      %p93 = scmp.ne.s32.totalorder %s76, %s92
      %p94 = scmp.eq.s32.totalorder %s21, 0
      %p95 = por %p93, %p94
      %s96 = ssub.s32 %s15, %s22
      %p97 = scmp.eq.s32.totalorder %s96, 0
      %s99 = sadd.s32 %s98, 1
      %s100 = scalar_select %p97, %s98, %s99
      %p103 = pneg %p97
      %p104 = scmp.eq.s32.totalorder %s15, 1
      %p105 = por %p103, %p104
      %p106 = scmp.ne.s32.totalorder %s98, %s101
      %p107 = scmp.eq.s32.totalorder %s15, 0
      %p108 = por %p106, %p107
      %p109 = scmp.ne.s32.totalorder %s98, %s101
      %p110 = scmp.eq.s32.totalorder %s20, 1
      %p111 = por %p109, %p110
      %p112 = scmp.ne.s32.totalorder %s101, %s102
      %p113 = scmp.eq.s32.totalorder %s20, 0
      %p114 = por %p112, %p113
      %p115 = scmp.ne.s32.totalorder %s101, %s102
      %p116 = scmp.eq.s32.totalorder %s21, 1
      %p117 = por %p115, %p116
      %p119 = scmp.ne.s32.totalorder %s102, %s118
      %p120 = scmp.eq.s32.totalorder %s21, 0
      %p121 = por %p119, %p120
      %p122 = scmp.le.s32.totalorder 1, %s15
      %p123 = scmp.lt.s32.totalorder %s15, 3
      %p124 = pnand %p122, %p123
      %p125 = pneg %p124
      // Predicated region
      $region9: #{model_forward.1} parent=5 // pred_check
        _
      $region10: #{model_forward.1} parent=5 // pred_check_branch
        %127 = sbr.rel (%p124) target = $region12
      $region11: #{model_forward.1} parent=5 // pred_region
        %s128 = ssub.s32 %s15, 1
        // Predicated region
        $region13: #{model_forward.1} parent=11 // pred_check
          %p129 = pneg %p36
        $region14: #{model_forward.1} parent=11 // pred_check_branch
          %131 = sbr.rel (%p129) target = $region16
        $region15: #{model_forward.1} parent=11 // pred_region
          _
        $region16: #{model_forward.1} parent=11 // pred_fallthru
          _
      $region12: #{model_forward.1} parent=5 // pred_fallthru
        _
      %p132 = scmp.lt.s32.totalorder %s15, 2
      // Predicated region
      $region17: #{model_forward.1} parent=5 // pred_check
        %p133 = pneg %p132
      $region18: #{model_forward.1} parent=5 // pred_check_branch
        %135 = sbr.rel (%p133) target = $region20
      $region19: #{model_forward.1} parent=5 // pred_region
        // Predicated region
        $region21: #{model_forward.1} parent=19 // pred_check
          %p136 = pneg %p56
        $region22: #{model_forward.1} parent=19 // pred_check_branch
          %138 = sbr.rel (%p136) target = $region24
        $region23: #{model_forward.1} parent=19 // pred_region
          %s139 = sand.u32 %s46, 1
          %s140 = scalar_lea.sflag [#allocation3], %s139
          %s141 = sand.u32 %s46, 1
          %s142 = smul.addr %s141, 512
          %s143 = scalar_lea.vmem [#allocation2], %s142
          %s144 = smul.u32 16, %s15
          %s146 = ssub.s32 8192, 8192
          %147 = vsyncadd %s140, %s146
          %s148 = smul.addr %s144, 64
          %s149 = scalar_lea.hbm %s1, %s148
          %s150 = sshll.u32 %s143, 4
          %s151 = int_to_ptr.vmem [resolvable:$true] %s150
          %156 = dma.hbm_to_vmem [thread:$0]  %s149, 8192, %s151, %s140, 2048, 1024, 64
        $region24: #{model_forward.1} parent=19 // pred_fallthru
          _
        // Predicated region
        $region25: #{model_forward.1} parent=19 // pred_check
          %p157 = pneg %p82
        $region26: #{model_forward.1} parent=19 // pred_check_branch
          %159 = sbr.rel (%p157) target = $region28
        $region27: #{model_forward.1} parent=19 // pred_region
          %s160 = sand.u32 %s72, 1
          %s161 = scalar_lea.sflag [#allocation5], %s160
          %s162 = sand.u32 %s72, 1
          %s163 = smul.addr %s162, 16
          %s164 = scalar_lea.vmem [#allocation4], %s163
          %s165 = smul.u32 16, %s15
          %s167 = ssub.s32 256, 256
          %168 = vsyncadd %s161, %s167
          %s169 = smul.addr %s165, 16
          %s170 = scalar_lea.hbm %s2, %s169
          %s172 = sshll.u32 %s164, 4
          %s173 = int_to_ptr.vmem [resolvable:$true] %s172
          %175 = dma.hbm_to_vmem [thread:$0]  %s170, 256, %s173, %s161
        $region28: #{model_forward.1} parent=19 // pred_fallthru
          _
      $region20: #{model_forward.1} parent=5 // pred_fallthru
        _
      %p176 = scmp.le.s32.totalorder 1, %s15
      %p177 = scmp.lt.s32.totalorder %s15, 3
      %p178 = pnand %p176, %p177
      %p179 = pneg %p178
      // Predicated region
      $region29: #{model_forward.1} parent=5 // pred_check
        _
      $region30: #{model_forward.1} parent=5 // pred_check_branch
        %181 = sbr.rel (%p178) target = $region32
      $region31: #{model_forward.1} parent=5 // pred_region
        %s182 = ssub.s32 %s15, 1
        %s183 = sand.u32 %s49, 1
        %s184 = scalar_lea.sflag [#allocation3], %s183
        %s185 = sand.u32 %s49, 1
        %s186 = smul.addr %s185, 512
        %s187 = scalar_lea.vmem [#allocation2], %s186
        // Predicated region
        $region33: #{model_forward.1} parent=31 // pred_check
          %p188 = pneg %p62
        $region34: #{model_forward.1} parent=31 // pred_check_branch
          %190 = sbr.rel (%p188) target = $region36
        $region35: #{model_forward.1} parent=31 // pred_region
          %191 = dma.done %s184, 8192
        $region36: #{model_forward.1} parent=31 // pred_fallthru
          _
        %s192 = sand.u32 %s75, 1
        %s193 = scalar_lea.sflag [#allocation5], %s192
        %s194 = sand.u32 %s75, 1
        %s195 = smul.addr %s194, 16
        %s196 = scalar_lea.vmem [#allocation4], %s195
        // Predicated region
        $region37: #{model_forward.1} parent=31 // pred_check
          %p197 = pneg %p88
        $region38: #{model_forward.1} parent=31 // pred_check_branch
          %199 = sbr.rel (%p197) target = $region40
        $region39: #{model_forward.1} parent=31 // pred_region
          %200 = dma.done %s193, 256
        $region40: #{model_forward.1} parent=31 // pred_fallthru
          _
        %p201 = pneg %p36
        %p202 = pneg %p33
        %s203 = sand.u32 %s49, 1
        %s204 = scalar_lea.sflag [#allocation3], %s203
        %s205 = sand.u32 %s49, 1
        %s206 = smul.addr %s205, 512
        %s207 = scalar_lea.vmem [#allocation2], %s206
        %p208 = pneg %p62
        %p209 = pneg %p59
        %s210 = sand.u32 %s75, 1
        %s211 = scalar_lea.sflag [#allocation5], %s210
        %s212 = sand.u32 %s75, 1
        %s213 = smul.addr %s212, 16
        %s214 = scalar_lea.vmem [#allocation4], %s213
        %p215 = pneg %p88
        %p216 = pneg %p85
        %p217 = pneg %p114
        %p218 = pneg %p111
        %s219 = sand.u32 %s101, 1
        %s220 = sand.u32 %s101, 1
        %s221 = smul.addr %s220, 1024
        %s222 = scalar_lea.vmem [#allocation6], %s221
        %s223 = smul.u32 16, %s20
        %s224 = smul.u32 16, %s20
        %s225 = smul.u32 4, %s20
        %v227 = vld [vmem:[%s0] sm:$0xf]
        %v228 = vld [vmem:[%s0 + $0x4] sm:$0xf]
        %v229 = vld [vmem:[%s0 + $0x8] sm:$0xf]
        %v230 = vld [vmem:[%s0 + $0xc] sm:$0xf]
        %v231 = vld [vmem:[%s0 + $0x10] sm:$0xf]
        %v232 = vld [vmem:[%s0 + $0x14] sm:$0xf]
        %v233 = vld [vmem:[%s0 + $0x18] sm:$0xf]
        %v234 = vld [vmem:[%s0 + $0x1c] sm:$0xf]
        %v235 = vld [vmem:[%s187] sm:$0xff]
        %v236 = vld [vmem:[%s187 + $0x8] sm:$0xff]
        %v237 = vld [vmem:[%s187 + $0x10] sm:$0xff]
        %v238 = vld [vmem:[%s187 + $0x18] sm:$0xff]
        %v239 = vld [vmem:[%s187 + $0x20] sm:$0xff]
        %v240 = vld [vmem:[%s187 + $0x28] sm:$0xff]
        %v241 = vld [vmem:[%s187 + $0x30] sm:$0xff]
        %v242 = vld [vmem:[%s187 + $0x38] sm:$0xff]
        %v243 = vld [vmem:[%s187 + $0x40] sm:$0xff]
        %v244 = vld [vmem:[%s187 + $0x48] sm:$0xff]
        %v245 = vld [vmem:[%s187 + $0x50] sm:$0xff]
        %v246 = vld [vmem:[%s187 + $0x58] sm:$0xff]
        %v247 = vld [vmem:[%s187 + $0x60] sm:$0xff]
        %v248 = vld [vmem:[%s187 + $0x68] sm:$0xff]
        %v249 = vld [vmem:[%s187 + $0x70] sm:$0xff]
        %v250 = vld [vmem:[%s187 + $0x78] sm:$0xff]
        %v251 = vld [vmem:[%s187 + $0x80] sm:$0xff]
        %v252 = vld [vmem:[%s187 + $0x88] sm:$0xff]
        %v253 = vld [vmem:[%s187 + $0x90] sm:$0xff]
        %v254 = vld [vmem:[%s187 + $0x98] sm:$0xff]
        %v255 = vld [vmem:[%s187 + $0xa0] sm:$0xff]
        %v256 = vld [vmem:[%s187 + $0xa8] sm:$0xff]
        %v257 = vld [vmem:[%s187 + $0xb0] sm:$0xff]
        %v258 = vld [vmem:[%s187 + $0xb8] sm:$0xff]
        %v259 = vld [vmem:[%s187 + $0xc0] sm:$0xff]
        %v260 = vld [vmem:[%s187 + $0xc8] sm:$0xff]
        %v261 = vld [vmem:[%s187 + $0xd0] sm:$0xff]
        %v262 = vld [vmem:[%s187 + $0xd8] sm:$0xff]
        %v263 = vld [vmem:[%s187 + $0xe0] sm:$0xff]
        %v264 = vld [vmem:[%s187 + $0xe8] sm:$0xff]
        %v265 = vld [vmem:[%s187 + $0xf0] sm:$0xff]
        %v266 = vld [vmem:[%s187 + $0xf8] sm:$0xff]
        %v267 = vld [vmem:[%s187 + $0x100] sm:$0xff]
        %v268 = vld [vmem:[%s187 + $0x108] sm:$0xff]
        %v269 = vld [vmem:[%s187 + $0x110] sm:$0xff]
        %v270 = vld [vmem:[%s187 + $0x118] sm:$0xff]
        %v271 = vld [vmem:[%s187 + $0x120] sm:$0xff]
        %v272 = vld [vmem:[%s187 + $0x128] sm:$0xff]
        %v273 = vld [vmem:[%s187 + $0x130] sm:$0xff]
        %v274 = vld [vmem:[%s187 + $0x138] sm:$0xff]
        %v275 = vld [vmem:[%s187 + $0x140] sm:$0xff]
        %v276 = vld [vmem:[%s187 + $0x148] sm:$0xff]
        %v277 = vld [vmem:[%s187 + $0x150] sm:$0xff]
        %v278 = vld [vmem:[%s187 + $0x158] sm:$0xff]
        %v279 = vld [vmem:[%s187 + $0x160] sm:$0xff]
        %v280 = vld [vmem:[%s187 + $0x168] sm:$0xff]
        %v281 = vld [vmem:[%s187 + $0x170] sm:$0xff]
        %v282 = vld [vmem:[%s187 + $0x178] sm:$0xff]
        %v283 = vld [vmem:[%s187 + $0x180] sm:$0xff]
        %v284 = vld [vmem:[%s187 + $0x188] sm:$0xff]
        %v285 = vld [vmem:[%s187 + $0x190] sm:$0xff]
        %v286 = vld [vmem:[%s187 + $0x198] sm:$0xff]
        %v287 = vld [vmem:[%s187 + $0x1a0] sm:$0xff]
        %v288 = vld [vmem:[%s187 + $0x1a8] sm:$0xff]
        %v289 = vld [vmem:[%s187 + $0x1b0] sm:$0xff]
        %v290 = vld [vmem:[%s187 + $0x1b8] sm:$0xff]
        %v291 = vld [vmem:[%s187 + $0x1c0] sm:$0xff]
        %v292 = vld [vmem:[%s187 + $0x1c8] sm:$0xff]
        %v293 = vld [vmem:[%s187 + $0x1d0] sm:$0xff]
        %v294 = vld [vmem:[%s187 + $0x1d8] sm:$0xff]
        %v295 = vld [vmem:[%s187 + $0x1e0] sm:$0xff]
        %v296 = vld [vmem:[%s187 + $0x1e8] sm:$0xff]
        %v297 = vld [vmem:[%s187 + $0x1f0] sm:$0xff]
        %v298 = vld [vmem:[%s187 + $0x1f8] sm:$0xff]
        %v299 = vld [vmem:[%s196] sm:$0xff]
        %v300 = vld [vmem:[%s196 + $0x8] sm:$0xff]
        %v303 = vlaneseq
        %v304 = vshrl.u32 %v303, 7
        %v305 = vsub.s32 0, %v304
        %v306 = vrot.slane %v299, %v305
        %v307 = vlaneseq
        %v308 = vshrl.u32 %v307, 7
        %v309 = vsub.s32 1, %v308
        %v310 = vrot.slane %v299, %v309
        %v311 = vlaneseq
        %v312 = vshrl.u32 %v311, 7
        %v313 = vsub.s32 2, %v312
        %v314 = vrot.slane %v299, %v313
        %v315 = vlaneseq
        %v316 = vshrl.u32 %v315, 7
        %v317 = vsub.s32 3, %v316
        %v318 = vrot.slane %v299, %v317
        %v319 = vlaneseq
        %v320 = vshrl.u32 %v319, 7
        %v321 = vsub.s32 4, %v320
        %v322 = vrot.slane %v299, %v321
        %v323 = vlaneseq
        %v324 = vshrl.u32 %v323, 7
        %v325 = vsub.s32 5, %v324
        %v326 = vrot.slane %v299, %v325
        %v327 = vlaneseq
        %v328 = vshrl.u32 %v327, 7
        %v329 = vsub.s32 6, %v328
        %v330 = vrot.slane %v299, %v329
        %v331 = vlaneseq
        %v332 = vshrl.u32 %v331, 7
        %v333 = vsub.s32 7, %v332
        %v334 = vrot.slane %v299, %v333
        %v335 = vlaneseq
        %v336 = vshrl.u32 %v335, 7
        %v337 = vsub.s32 0, %v336
        %v338 = vrot.slane %v300, %v337
        %v339 = vlaneseq
        %v340 = vshrl.u32 %v339, 7
        %v341 = vsub.s32 1, %v340
        %v342 = vrot.slane %v300, %v341
        %v343 = vlaneseq
        %v344 = vshrl.u32 %v343, 7
        %v345 = vsub.s32 2, %v344
        %v346 = vrot.slane %v300, %v345
        %v347 = vlaneseq
        %v348 = vshrl.u32 %v347, 7
        %v349 = vsub.s32 3, %v348
        %v350 = vrot.slane %v300, %v349
        %v351 = vlaneseq
        %v352 = vshrl.u32 %v351, 7
        %v353 = vsub.s32 4, %v352
        %v354 = vrot.slane %v300, %v353
        %v355 = vlaneseq
        %v356 = vshrl.u32 %v355, 7
        %v357 = vsub.s32 5, %v356
        %v358 = vrot.slane %v300, %v357
        %v359 = vlaneseq
        %v360 = vshrl.u32 %v359, 7
        %v361 = vsub.s32 6, %v360
        %v362 = vrot.slane %v300, %v361
        %v363 = vlaneseq
        %v364 = vshrl.u32 %v363, 7
        %v365 = vsub.s32 7, %v364
        %v366 = vrot.slane %v300, %v365
        %v391 = vunpack.c.l.b16 %v227
        %v392 = vunpack.c.l.b16 %v228
        %v393 = vunpack.c.l.b16 %v229
        %v394 = vunpack.c.l.b16 %v230
        %v395 = vunpack.c.l.b16 %v231
        %v396 = vunpack.c.l.b16 %v232
        %v397 = vunpack.c.l.b16 %v233
        %v398 = vunpack.c.l.b16 %v234
        %v399 = vpack.c.b16 %v392, %v391
        %v400 = vpack.c.b16 %v394, %v393
        %v401 = vpack.c.b16 %v396, %v395
        %v402 = vpack.c.b16 %v398, %v397
        %v467 = vunpack.c.l.b16 %v235
        %v468 = vunpack.c.h.b16 %v235
        %v469 = vunpack.c.l.b16 %v236
        %v470 = vunpack.c.h.b16 %v236
        %v471 = vunpack.c.l.b16 %v237
        %v472 = vunpack.c.h.b16 %v237
        %v473 = vunpack.c.l.b16 %v238
        %v474 = vunpack.c.h.b16 %v238
        %v475 = vunpack.c.l.b16 %v239
        %v476 = vunpack.c.h.b16 %v239
        %v477 = vunpack.c.l.b16 %v240
        %v478 = vunpack.c.h.b16 %v240
        %v479 = vunpack.c.l.b16 %v241
        %v480 = vunpack.c.h.b16 %v241
        %v481 = vunpack.c.l.b16 %v242
        %v482 = vunpack.c.h.b16 %v242
        %v483 = vunpack.c.l.b16 %v243
        %v484 = vunpack.c.h.b16 %v243
        %v485 = vunpack.c.l.b16 %v244
        %v486 = vunpack.c.h.b16 %v244
        %v487 = vunpack.c.l.b16 %v245
        %v488 = vunpack.c.h.b16 %v245
        %v489 = vunpack.c.l.b16 %v246
        %v490 = vunpack.c.h.b16 %v246
        %v491 = vunpack.c.l.b16 %v247
        %v492 = vunpack.c.h.b16 %v247
        %v493 = vunpack.c.l.b16 %v248
        %v494 = vunpack.c.h.b16 %v248
        %v495 = vunpack.c.l.b16 %v249
        %v496 = vunpack.c.h.b16 %v249
        %v497 = vunpack.c.l.b16 %v250
        %v498 = vunpack.c.h.b16 %v250
        %v499 = vunpack.c.l.b16 %v251
        %v500 = vunpack.c.h.b16 %v251
        %v501 = vunpack.c.l.b16 %v252
        %v502 = vunpack.c.h.b16 %v252
        %v503 = vunpack.c.l.b16 %v253
        %v504 = vunpack.c.h.b16 %v253
        %v505 = vunpack.c.l.b16 %v254
        %v506 = vunpack.c.h.b16 %v254
        %v507 = vunpack.c.l.b16 %v255
        %v508 = vunpack.c.h.b16 %v255
        %v509 = vunpack.c.l.b16 %v256
        %v510 = vunpack.c.h.b16 %v256
        %v511 = vunpack.c.l.b16 %v257
        %v512 = vunpack.c.h.b16 %v257
        %v513 = vunpack.c.l.b16 %v258
        %v514 = vunpack.c.h.b16 %v258
        %v515 = vunpack.c.l.b16 %v259
        %v516 = vunpack.c.h.b16 %v259
        %v517 = vunpack.c.l.b16 %v260
        %v518 = vunpack.c.h.b16 %v260
        %v519 = vunpack.c.l.b16 %v261
        %v520 = vunpack.c.h.b16 %v261
        %v521 = vunpack.c.l.b16 %v262
        %v522 = vunpack.c.h.b16 %v262
        %v523 = vunpack.c.l.b16 %v263
        %v524 = vunpack.c.h.b16 %v263
        %v525 = vunpack.c.l.b16 %v264
        %v526 = vunpack.c.h.b16 %v264
        %v527 = vunpack.c.l.b16 %v265
        %v528 = vunpack.c.h.b16 %v265
        %v529 = vunpack.c.l.b16 %v266
        %v530 = vunpack.c.h.b16 %v266
        %v531 = vunpack.c.l.b16 %v267
        %v532 = vunpack.c.h.b16 %v267
        %v533 = vunpack.c.l.b16 %v268
        %v534 = vunpack.c.h.b16 %v268
        %v535 = vunpack.c.l.b16 %v269
        %v536 = vunpack.c.h.b16 %v269
        %v537 = vunpack.c.l.b16 %v270
        %v538 = vunpack.c.h.b16 %v270
        %v539 = vunpack.c.l.b16 %v271
        %v540 = vunpack.c.h.b16 %v271
        %v541 = vunpack.c.l.b16 %v272
        %v542 = vunpack.c.h.b16 %v272
        %v543 = vunpack.c.l.b16 %v273
        %v544 = vunpack.c.h.b16 %v273
        %v545 = vunpack.c.l.b16 %v274
        %v546 = vunpack.c.h.b16 %v274
        %v547 = vunpack.c.l.b16 %v275
        %v548 = vunpack.c.h.b16 %v275
        %v549 = vunpack.c.l.b16 %v276
        %v550 = vunpack.c.h.b16 %v276
        %v551 = vunpack.c.l.b16 %v277
        %v552 = vunpack.c.h.b16 %v277
        %v553 = vunpack.c.l.b16 %v278
        %v554 = vunpack.c.h.b16 %v278
        %v555 = vunpack.c.l.b16 %v279
        %v556 = vunpack.c.h.b16 %v279
        %v557 = vunpack.c.l.b16 %v280
        %v558 = vunpack.c.h.b16 %v280
        %v559 = vunpack.c.l.b16 %v281
        %v560 = vunpack.c.h.b16 %v281
        %v561 = vunpack.c.l.b16 %v282
        %v562 = vunpack.c.h.b16 %v282
        %v563 = vunpack.c.l.b16 %v283
        %v564 = vunpack.c.h.b16 %v283
        %v565 = vunpack.c.l.b16 %v284
        %v566 = vunpack.c.h.b16 %v284
        %v567 = vunpack.c.l.b16 %v285
        %v568 = vunpack.c.h.b16 %v285
        %v569 = vunpack.c.l.b16 %v286
        %v570 = vunpack.c.h.b16 %v286
        %v571 = vunpack.c.l.b16 %v287
        %v572 = vunpack.c.h.b16 %v287
        %v573 = vunpack.c.l.b16 %v288
        %v574 = vunpack.c.h.b16 %v288
        %v575 = vunpack.c.l.b16 %v289
        %v576 = vunpack.c.h.b16 %v289
        %v577 = vunpack.c.l.b16 %v290
        %v578 = vunpack.c.h.b16 %v290
        %v579 = vunpack.c.l.b16 %v291
        %v580 = vunpack.c.h.b16 %v291
        %v581 = vunpack.c.l.b16 %v292
        %v582 = vunpack.c.h.b16 %v292
        %v583 = vunpack.c.l.b16 %v293
        %v584 = vunpack.c.h.b16 %v293
        %v585 = vunpack.c.l.b16 %v294
        %v586 = vunpack.c.h.b16 %v294
        %v587 = vunpack.c.l.b16 %v295
        %v588 = vunpack.c.h.b16 %v295
        %v589 = vunpack.c.l.b16 %v296
        %v590 = vunpack.c.h.b16 %v296
        %v591 = vunpack.c.l.b16 %v297
        %v592 = vunpack.c.h.b16 %v297
        %v593 = vunpack.c.l.b16 %v298
        %v594 = vunpack.c.h.b16 %v298
        %v595 = vpack.c.b16 %v483, %v467
        %v596 = vpack.c.b16 %v484, %v468
        %v597 = vpack.c.b16 %v485, %v469
        %v598 = vpack.c.b16 %v486, %v470
        %v599 = vpack.c.b16 %v487, %v471
        %v600 = vpack.c.b16 %v488, %v472
        %v601 = vpack.c.b16 %v489, %v473
        %v602 = vpack.c.b16 %v490, %v474
        %v603 = vpack.c.b16 %v491, %v475
        %v604 = vpack.c.b16 %v492, %v476
        %v605 = vpack.c.b16 %v493, %v477
        %v606 = vpack.c.b16 %v494, %v478
        %v607 = vpack.c.b16 %v495, %v479
        %v608 = vpack.c.b16 %v496, %v480
        %v609 = vpack.c.b16 %v497, %v481
        %v610 = vpack.c.b16 %v498, %v482
        %v611 = vpack.c.b16 %v515, %v499
        %v612 = vpack.c.b16 %v516, %v500
        %v613 = vpack.c.b16 %v517, %v501
        %v614 = vpack.c.b16 %v518, %v502
        %v615 = vpack.c.b16 %v519, %v503
        %v616 = vpack.c.b16 %v520, %v504
        %v617 = vpack.c.b16 %v521, %v505
        %v618 = vpack.c.b16 %v522, %v506
        %v619 = vpack.c.b16 %v523, %v507
        %v620 = vpack.c.b16 %v524, %v508
        %v621 = vpack.c.b16 %v525, %v509
        %v622 = vpack.c.b16 %v526, %v510
        %v623 = vpack.c.b16 %v527, %v511
        %v624 = vpack.c.b16 %v528, %v512
        %v625 = vpack.c.b16 %v529, %v513
        %v626 = vpack.c.b16 %v530, %v514
        %v627 = vpack.c.b16 %v547, %v531
        %v628 = vpack.c.b16 %v548, %v532
        %v629 = vpack.c.b16 %v549, %v533
        %v630 = vpack.c.b16 %v550, %v534
        %v631 = vpack.c.b16 %v551, %v535
        %v632 = vpack.c.b16 %v552, %v536
        %v633 = vpack.c.b16 %v553, %v537
        %v634 = vpack.c.b16 %v554, %v538
        %v635 = vpack.c.b16 %v555, %v539
        %v636 = vpack.c.b16 %v556, %v540
        %v637 = vpack.c.b16 %v557, %v541
        %v638 = vpack.c.b16 %v558, %v542
        %v639 = vpack.c.b16 %v559, %v543
        %v640 = vpack.c.b16 %v560, %v544
        %v641 = vpack.c.b16 %v561, %v545
        %v642 = vpack.c.b16 %v562, %v546
        %v643 = vpack.c.b16 %v579, %v563
        %v644 = vpack.c.b16 %v580, %v564
        %v645 = vpack.c.b16 %v581, %v565
        %v646 = vpack.c.b16 %v582, %v566
        %v647 = vpack.c.b16 %v583, %v567
        %v648 = vpack.c.b16 %v584, %v568
        %v649 = vpack.c.b16 %v585, %v569
        %v650 = vpack.c.b16 %v586, %v570
        %v651 = vpack.c.b16 %v587, %v571
        %v652 = vpack.c.b16 %v588, %v572
        %v653 = vpack.c.b16 %v589, %v573
        %v654 = vpack.c.b16 %v590, %v574
        %v655 = vpack.c.b16 %v591, %v575
        %v656 = vpack.c.b16 %v592, %v576
        %v657 = vpack.c.b16 %v593, %v577
        %v658 = vpack.c.b16 %v594, %v578
        %vm723 = vcmask 523264
        %v725 = vsel %vm723, %v399, 0
        %v728 = vsel %vm723, %v400, 0
        %v731 = vsel %vm723, %v401, 0
        %v734 = vsel %vm723, %v402, 0
        %736 = vmatprep.subr.bf16.mxu0 %v596
        %737 = vmatpush1.bf16.msra.mxu0 %v595
        %738 = vmatprep.subr.bf16.mxu0 %v612
        %739 = vmatpush1.bf16.msra.mxu0 %v611
        %740 = vmatprep.subr.bf16.mxu0 %v628
        %741 = vmatpush1.bf16.msra.mxu0 %v627
        %742 = vmatprep.subr.bf16.mxu0 %v644
        %743 = vmatpush1.bf16.msra.mxu0 %v643
        %744 = vmatprep.subr.bf16.mxu0 0
        %745 = vmatpush1.bf16.msra.mxu0 0
        %746 = vmatprep.subr.bf16.mxu0 0
        %747 = vmatpush1.bf16.msra.mxu0 0
        %748 = vmatprep.subr.bf16.mxu0 0
        %749 = vmatpush1.bf16.msra.mxu0 0
        %750 = vmatprep.subr.bf16.mxu0 0
        %751 = vmatpush1.bf16.msra.mxu0 0
        %752 = vmatprep.subr.bf16.mxu0 0
        %753 = vmatpush1.bf16.msra.mxu0 0
        %754 = vmatprep.subr.bf16.mxu0 0
        %755 = vmatpush1.bf16.msra.mxu0 0
        %756 = vmatprep.subr.bf16.mxu0 0
        %757 = vmatpush1.bf16.msra.mxu0 0
        %758 = vmatprep.subr.bf16.mxu0 0
        %759 = vmatpush1.bf16.msra.mxu0 0
        %760 = vmatprep.subr.bf16.mxu0 0
        %761 = vmatpush1.bf16.msra.mxu0 0
        %762 = vmatprep.subr.bf16.mxu0 0
        %763 = vmatpush1.bf16.msra.mxu0 0
        %764 = vmatprep.subr.bf16.mxu0 0
        %765 = vmatpush1.bf16.msra.mxu0 0
        %766 = vmatprep.subr.bf16.mxu0 0
        %767 = vmatpush1.bf16.msra.mxu0 0
        %768 = vmatprep.mubr.bf16.mxu0 0
        %769 = vmatmul.mubr.bf16.gmra.mrb[0].mxu0 %v725
        %v770 = vpop.f32.mrb[0].mxu0
        %v771 = vadd.f32 %v306, %v770
        %v772 = vpop.f32.mrb[0].mxu0
        %v773 = vadd.f32 %v310, %v772
        %v774 = vpop.f32.mrb[0].mxu0
        %v775 = vadd.f32 %v306, %v774
        %v776 = vpop.f32.mrb[0].mxu0
        %v777 = vadd.f32 %v310, %v776
        %778 = vmatprep.mubr.bf16.mxu0 0
        %779 = vmatmul.mubr.bf16.gmra.mrb[0].mxu0 %v728
        %v780 = vpop.f32.mrb[0].mxu0
        %v781 = vadd.f32 %v306, %v780
        %v782 = vpop.f32.mrb[0].mxu0
        %v783 = vadd.f32 %v310, %v782
        %v784 = vpop.f32.mrb[0].mxu0
        %v785 = vadd.f32 %v306, %v784
        %v786 = vpop.f32.mrb[0].mxu0
        %v787 = vadd.f32 %v310, %v786
        %788 = vmatprep.mubr.bf16.mxu0 0
        %789 = vmatmul.mubr.bf16.gmra.mrb[0].mxu0 %v731
        %v790 = vpop.f32.mrb[0].mxu0
        %v791 = vadd.f32 %v306, %v790
        %v792 = vpop.f32.mrb[0].mxu0
        %v793 = vadd.f32 %v310, %v792
        %v794 = vpop.f32.mrb[0].mxu0
        %v795 = vadd.f32 %v306, %v794
        %v796 = vpop.f32.mrb[0].mxu0
        %v797 = vadd.f32 %v310, %v796
        %798 = vmatprep.mubr.bf16.mxu0 0
        %799 = vmatmul.mubr.bf16.gmra.mrb[0].mxu0 %v734
        %v800 = vpop.f32.mrb[0].mxu0
        %v801 = vadd.f32 %v306, %v800
        %v802 = vpop.f32.mrb[0].mxu0
        %v803 = vadd.f32 %v310, %v802
        %v804 = vpop.f32.mrb[0].mxu0
        %v805 = vadd.f32 %v306, %v804
        %v806 = vpop.f32.mrb[0].mxu0
        %v807 = vadd.f32 %v310, %v806
        %808 = vdwg.mxu0
        %809 = vmatprep.subr.bf16.mxu0 %v598
        %810 = vmatpush1.bf16.msra.mxu0 %v597
        %811 = vmatprep.subr.bf16.mxu0 %v614
        %812 = vmatpush1.bf16.msra.mxu0 %v613
        %813 = vmatprep.subr.bf16.mxu0 %v630
        %814 = vmatpush1.bf16.msra.mxu0 %v629
        %815 = vmatprep.subr.bf16.mxu0 %v646
        %816 = vmatpush1.bf16.msra.mxu0 %v645
        %817 = vmatprep.subr.bf16.mxu0 0
        %818 = vmatpush1.bf16.msra.mxu0 0
        %819 = vmatprep.subr.bf16.mxu0 0
        %820 = vmatpush1.bf16.msra.mxu0 0
        %821 = vmatprep.subr.bf16.mxu0 0
        %822 = vmatpush1.bf16.msra.mxu0 0
        %823 = vmatprep.subr.bf16.mxu0 0
        %824 = vmatpush1.bf16.msra.mxu0 0
        %825 = vmatprep.subr.bf16.mxu0 0
        %826 = vmatpush1.bf16.msra.mxu0 0
        %827 = vmatprep.subr.bf16.mxu0 0
        %828 = vmatpush1.bf16.msra.mxu0 0
        %829 = vmatprep.subr.bf16.mxu0 0
        %830 = vmatpush1.bf16.msra.mxu0 0
        %831 = vmatprep.subr.bf16.mxu0 0
        %832 = vmatpush1.bf16.msra.mxu0 0
        %833 = vmatprep.subr.bf16.mxu0 0
        %834 = vmatpush1.bf16.msra.mxu0 0
        %835 = vmatprep.subr.bf16.mxu0 0
        %836 = vmatpush1.bf16.msra.mxu0 0
        %837 = vmatprep.subr.bf16.mxu0 0
        %838 = vmatpush1.bf16.msra.mxu0 0
        %839 = vmatprep.subr.bf16.mxu0 0
        %840 = vmatpush1.bf16.msra.mxu0 0
        %841 = vmatprep.mubr.bf16.mxu0 0
        %842 = vmatmul.mubr.bf16.gmra.mrb[0].mxu0 %v725
        %v843 = vpop.f32.mrb[0].mxu0
        %v844 = vadd.f32 %v314, %v843
        %v845 = vpop.f32.mrb[0].mxu0
        %v846 = vadd.f32 %v318, %v845
        %v847 = vpop.f32.mrb[0].mxu0
        %v848 = vadd.f32 %v314, %v847
        %v849 = vpop.f32.mrb[0].mxu0
        %v850 = vadd.f32 %v318, %v849
        %851 = vmatprep.mubr.bf16.mxu0 0
        %852 = vmatmul.mubr.bf16.gmra.mrb[0].mxu0 %v728
        %v853 = vpop.f32.mrb[0].mxu0
        %v854 = vadd.f32 %v314, %v853
        %v855 = vpop.f32.mrb[0].mxu0
        %v856 = vadd.f32 %v318, %v855
        %v857 = vpop.f32.mrb[0].mxu0
        %v858 = vadd.f32 %v314, %v857
        %v859 = vpop.f32.mrb[0].mxu0
        %v860 = vadd.f32 %v318, %v859
        %861 = vmatprep.mubr.bf16.mxu0 0
        %862 = vmatmul.mubr.bf16.gmra.mrb[0].mxu0 %v731
        %v863 = vpop.f32.mrb[0].mxu0
        %v864 = vadd.f32 %v314, %v863
        %v865 = vpop.f32.mrb[0].mxu0
        %v866 = vadd.f32 %v318, %v865
        %v867 = vpop.f32.mrb[0].mxu0
        %v868 = vadd.f32 %v314, %v867
        %v869 = vpop.f32.mrb[0].mxu0
        %v870 = vadd.f32 %v318, %v869
        %871 = vmatprep.mubr.bf16.mxu0 0
        %872 = vmatmul.mubr.bf16.gmra.mrb[0].mxu0 %v734
        %v873 = vpop.f32.mrb[0].mxu0
        %v874 = vadd.f32 %v314, %v873
        %v875 = vpop.f32.mrb[0].mxu0
        %v876 = vadd.f32 %v318, %v875
        %v877 = vpop.f32.mrb[0].mxu0
        %v878 = vadd.f32 %v314, %v877
        %v879 = vpop.f32.mrb[0].mxu0
        %v880 = vadd.f32 %v318, %v879
        %881 = vdwg.mxu0
        %882 = vmatprep.subr.bf16.mxu0 %v600
        %883 = vmatpush1.bf16.msra.mxu0 %v599
        %884 = vmatprep.subr.bf16.mxu0 %v616
        %885 = vmatpush1.bf16.msra.mxu0 %v615
        %886 = vmatprep.subr.bf16.mxu0 %v632
        %887 = vmatpush1.bf16.msra.mxu0 %v631
        %888 = vmatprep.subr.bf16.mxu0 %v648
        %889 = vmatpush1.bf16.msra.mxu0 %v647
        %890 = vmatprep.subr.bf16.mxu0 0
        %891 = vmatpush1.bf16.msra.mxu0 0
        %892 = vmatprep.subr.bf16.mxu0 0
        %893 = vmatpush1.bf16.msra.mxu0 0
        %894 = vmatprep.subr.bf16.mxu0 0
        %895 = vmatpush1.bf16.msra.mxu0 0
        %896 = vmatprep.subr.bf16.mxu0 0
        %897 = vmatpush1.bf16.msra.mxu0 0
        %898 = vmatprep.subr.bf16.mxu0 0
        %899 = vmatpush1.bf16.msra.mxu0 0
        %900 = vmatprep.subr.bf16.mxu0 0
        %901 = vmatpush1.bf16.msra.mxu0 0
        %902 = vmatprep.subr.bf16.mxu0 0
        %903 = vmatpush1.bf16.msra.mxu0 0
        %904 = vmatprep.subr.bf16.mxu0 0
        %905 = vmatpush1.bf16.msra.mxu0 0
        %906 = vmatprep.subr.bf16.mxu0 0
        %907 = vmatpush1.bf16.msra.mxu0 0
        %908 = vmatprep.subr.bf16.mxu0 0
        %909 = vmatpush1.bf16.msra.mxu0 0
        %910 = vmatprep.subr.bf16.mxu0 0
        %911 = vmatpush1.bf16.msra.mxu0 0
        %912 = vmatprep.subr.bf16.mxu0 0
        %913 = vmatpush1.bf16.msra.mxu0 0
        %914 = vmatprep.mubr.bf16.mxu0 0
        %915 = vmatmul.mubr.bf16.gmra.mrb[0].mxu0 %v725
        %v916 = vpop.f32.mrb[0].mxu0
        %v917 = vadd.f32 %v322, %v916
        %v918 = vpop.f32.mrb[0].mxu0
        %v919 = vadd.f32 %v326, %v918
        %v920 = vpop.f32.mrb[0].mxu0
        %v921 = vadd.f32 %v322, %v920
        %v922 = vpop.f32.mrb[0].mxu0
        %v923 = vadd.f32 %v326, %v922
        %924 = vmatprep.mubr.bf16.mxu0 0
        %925 = vmatmul.mubr.bf16.gmra.mrb[0].mxu0 %v728
        %v926 = vpop.f32.mrb[0].mxu0
        %v927 = vadd.f32 %v322, %v926
        %v928 = vpop.f32.mrb[0].mxu0
        %v929 = vadd.f32 %v326, %v928
        %v930 = vpop.f32.mrb[0].mxu0
        %v931 = vadd.f32 %v322, %v930
        %v932 = vpop.f32.mrb[0].mxu0
        %v933 = vadd.f32 %v326, %v932
        %934 = vmatprep.mubr.bf16.mxu0 0
        %935 = vmatmul.mubr.bf16.gmra.mrb[0].mxu0 %v731
        %v936 = vpop.f32.mrb[0].mxu0
        %v937 = vadd.f32 %v322, %v936
        %v938 = vpop.f32.mrb[0].mxu0
        %v939 = vadd.f32 %v326, %v938
        %v940 = vpop.f32.mrb[0].mxu0
        %v941 = vadd.f32 %v322, %v940
        %v942 = vpop.f32.mrb[0].mxu0
        %v943 = vadd.f32 %v326, %v942
        %944 = vmatprep.mubr.bf16.mxu0 0
        %945 = vmatmul.mubr.bf16.gmra.mrb[0].mxu0 %v734
        %v946 = vpop.f32.mrb[0].mxu0
        %v947 = vadd.f32 %v322, %v946
        %v948 = vpop.f32.mrb[0].mxu0
        %v949 = vadd.f32 %v326, %v948
        %v950 = vpop.f32.mrb[0].mxu0
        %v951 = vadd.f32 %v322, %v950
        %v952 = vpop.f32.mrb[0].mxu0
        %v953 = vadd.f32 %v326, %v952
        %954 = vdwg.mxu0
        %955 = vmatprep.subr.bf16.mxu0 %v602
        %956 = vmatpush1.bf16.msra.mxu0 %v601
        %957 = vmatprep.subr.bf16.mxu0 %v618
        %958 = vmatpush1.bf16.msra.mxu0 %v617
        %959 = vmatprep.subr.bf16.mxu0 %v634
        %960 = vmatpush1.bf16.msra.mxu0 %v633
        %961 = vmatprep.subr.bf16.mxu0 %v650
        %962 = vmatpush1.bf16.msra.mxu0 %v649
        %963 = vmatprep.subr.bf16.mxu0 0
        %964 = vmatpush1.bf16.msra.mxu0 0
        %965 = vmatprep.subr.bf16.mxu0 0
        %966 = vmatpush1.bf16.msra.mxu0 0
        %967 = vmatprep.subr.bf16.mxu0 0
        %968 = vmatpush1.bf16.msra.mxu0 0
        %969 = vmatprep.subr.bf16.mxu0 0
        %970 = vmatpush1.bf16.msra.mxu0 0
        %971 = vmatprep.subr.bf16.mxu0 0
        %972 = vmatpush1.bf16.msra.mxu0 0
        %973 = vmatprep.subr.bf16.mxu0 0
        %974 = vmatpush1.bf16.msra.mxu0 0
        %975 = vmatprep.subr.bf16.mxu0 0
        %976 = vmatpush1.bf16.msra.mxu0 0
        %977 = vmatprep.subr.bf16.mxu0 0
        %978 = vmatpush1.bf16.msra.mxu0 0
        %979 = vmatprep.subr.bf16.mxu0 0
        %980 = vmatpush1.bf16.msra.mxu0 0
        %981 = vmatprep.subr.bf16.mxu0 0
        %982 = vmatpush1.bf16.msra.mxu0 0
        %983 = vmatprep.subr.bf16.mxu0 0
        %984 = vmatpush1.bf16.msra.mxu0 0
        %985 = vmatprep.subr.bf16.mxu0 0
        %986 = vmatpush1.bf16.msra.mxu0 0
        %987 = vmatprep.mubr.bf16.mxu0 0
        %988 = vmatmul.mubr.bf16.gmra.mrb[0].mxu0 %v725
        %v989 = vpop.f32.mrb[0].mxu0
        %v990 = vadd.f32 %v330, %v989
        %v991 = vpop.f32.mrb[0].mxu0
        %v992 = vadd.f32 %v334, %v991
        %v993 = vpop.f32.mrb[0].mxu0
        %v994 = vadd.f32 %v330, %v993
        %v995 = vpop.f32.mrb[0].mxu0
        %v996 = vadd.f32 %v334, %v995
        %997 = vmatprep.mubr.bf16.mxu0 0
        %998 = vmatmul.mubr.bf16.gmra.mrb[0].mxu0 %v728
        %v999 = vpop.f32.mrb[0].mxu0
        %v1000 = vadd.f32 %v330, %v999
        %v1001 = vpop.f32.mrb[0].mxu0
        %v1002 = vadd.f32 %v334, %v1001
        %v1003 = vpop.f32.mrb[0].mxu0
        %v1004 = vadd.f32 %v330, %v1003
        %v1005 = vpop.f32.mrb[0].mxu0
        %v1006 = vadd.f32 %v334, %v1005
        %1007 = vmatprep.mubr.bf16.mxu0 0
        %1008 = vmatmul.mubr.bf16.gmra.mrb[0].mxu0 %v731
        %v1009 = vpop.f32.mrb[0].mxu0
        %v1010 = vadd.f32 %v330, %v1009
        %v1011 = vpop.f32.mrb[0].mxu0
        %v1012 = vadd.f32 %v334, %v1011
        %v1013 = vpop.f32.mrb[0].mxu0
        %v1014 = vadd.f32 %v330, %v1013
        %v1015 = vpop.f32.mrb[0].mxu0
        %v1016 = vadd.f32 %v334, %v1015
        %1017 = vmatprep.mubr.bf16.mxu0 0
        %1018 = vmatmul.mubr.bf16.gmra.mrb[0].mxu0 %v734
        %v1019 = vpop.f32.mrb[0].mxu0
        %v1020 = vadd.f32 %v330, %v1019
        %v1021 = vpop.f32.mrb[0].mxu0
        %v1022 = vadd.f32 %v334, %v1021
        %v1023 = vpop.f32.mrb[0].mxu0
        %v1024 = vadd.f32 %v330, %v1023
        %v1025 = vpop.f32.mrb[0].mxu0
        %v1026 = vadd.f32 %v334, %v1025
        %1027 = vdwg.mxu0
        %1028 = vmatprep.subr.bf16.mxu0 %v604
        %1029 = vmatpush1.bf16.msra.mxu0 %v603
        %1030 = vmatprep.subr.bf16.mxu0 %v620
        %1031 = vmatpush1.bf16.msra.mxu0 %v619
        %1032 = vmatprep.subr.bf16.mxu0 %v636
        %1033 = vmatpush1.bf16.msra.mxu0 %v635
        %1034 = vmatprep.subr.bf16.mxu0 %v652
        %1035 = vmatpush1.bf16.msra.mxu0 %v651
        %1036 = vmatprep.subr.bf16.mxu0 0
        %1037 = vmatpush1.bf16.msra.mxu0 0
        %1038 = vmatprep.subr.bf16.mxu0 0
        %1039 = vmatpush1.bf16.msra.mxu0 0
        %1040 = vmatprep.subr.bf16.mxu0 0
        %1041 = vmatpush1.bf16.msra.mxu0 0
        %1042 = vmatprep.subr.bf16.mxu0 0
        %1043 = vmatpush1.bf16.msra.mxu0 0
        %1044 = vmatprep.subr.bf16.mxu0 0
        %1045 = vmatpush1.bf16.msra.mxu0 0
        %1046 = vmatprep.subr.bf16.mxu0 0
        %1047 = vmatpush1.bf16.msra.mxu0 0
        %1048 = vmatprep.subr.bf16.mxu0 0
        %1049 = vmatpush1.bf16.msra.mxu0 0
        %1050 = vmatprep.subr.bf16.mxu0 0
        %1051 = vmatpush1.bf16.msra.mxu0 0
        %1052 = vmatprep.subr.bf16.mxu0 0
        %1053 = vmatpush1.bf16.msra.mxu0 0
        %1054 = vmatprep.subr.bf16.mxu0 0
        %1055 = vmatpush1.bf16.msra.mxu0 0
        %1056 = vmatprep.subr.bf16.mxu0 0
        %1057 = vmatpush1.bf16.msra.mxu0 0
        %1058 = vmatprep.subr.bf16.mxu0 0
        %1059 = vmatpush1.bf16.msra.mxu0 0
        %1060 = vmatprep.mubr.bf16.mxu0 0
        %1061 = vmatmul.mubr.bf16.gmra.mrb[0].mxu0 %v725
        %v1062 = vpop.f32.mrb[0].mxu0
        %v1063 = vadd.f32 %v338, %v1062
        %v1064 = vpop.f32.mrb[0].mxu0
        %v1065 = vadd.f32 %v342, %v1064
        %v1066 = vpop.f32.mrb[0].mxu0
        %v1067 = vadd.f32 %v338, %v1066
        %v1068 = vpop.f32.mrb[0].mxu0
        %v1069 = vadd.f32 %v342, %v1068
        %1070 = vmatprep.mubr.bf16.mxu0 0
        %1071 = vmatmul.mubr.bf16.gmra.mrb[0].mxu0 %v728
        %v1072 = vpop.f32.mrb[0].mxu0
        %v1073 = vadd.f32 %v338, %v1072
        %v1074 = vpop.f32.mrb[0].mxu0
        %v1075 = vadd.f32 %v342, %v1074
        %v1076 = vpop.f32.mrb[0].mxu0
        %v1077 = vadd.f32 %v338, %v1076
        %v1078 = vpop.f32.mrb[0].mxu0
        %v1079 = vadd.f32 %v342, %v1078
        %1080 = vmatprep.mubr.bf16.mxu0 0
        %1081 = vmatmul.mubr.bf16.gmra.mrb[0].mxu0 %v731
        %v1082 = vpop.f32.mrb[0].mxu0
        %v1083 = vadd.f32 %v338, %v1082
        %v1084 = vpop.f32.mrb[0].mxu0
        %v1085 = vadd.f32 %v342, %v1084
        %v1086 = vpop.f32.mrb[0].mxu0
        %v1087 = vadd.f32 %v338, %v1086
        %v1088 = vpop.f32.mrb[0].mxu0
        %v1089 = vadd.f32 %v342, %v1088
        %1090 = vmatprep.mubr.bf16.mxu0 0
        %1091 = vmatmul.mubr.bf16.gmra.mrb[0].mxu0 %v734
        %v1092 = vpop.f32.mrb[0].mxu0
        %v1093 = vadd.f32 %v338, %v1092
        %v1094 = vpop.f32.mrb[0].mxu0
        %v1095 = vadd.f32 %v342, %v1094
        %v1096 = vpop.f32.mrb[0].mxu0
        %v1097 = vadd.f32 %v338, %v1096
        %v1098 = vpop.f32.mrb[0].mxu0
        %v1099 = vadd.f32 %v342, %v1098
        %1100 = vdwg.mxu0
        %1101 = vmatprep.subr.bf16.mxu0 %v606
        %1102 = vmatpush1.bf16.msra.mxu0 %v605
        %1103 = vmatprep.subr.bf16.mxu0 %v622
        %1104 = vmatpush1.bf16.msra.mxu0 %v621
        %1105 = vmatprep.subr.bf16.mxu0 %v638
        %1106 = vmatpush1.bf16.msra.mxu0 %v637
        %1107 = vmatprep.subr.bf16.mxu0 %v654
        %1108 = vmatpush1.bf16.msra.mxu0 %v653
        %1109 = vmatprep.subr.bf16.mxu0 0
        %1110 = vmatpush1.bf16.msra.mxu0 0
        %1111 = vmatprep.subr.bf16.mxu0 0
        %1112 = vmatpush1.bf16.msra.mxu0 0
        %1113 = vmatprep.subr.bf16.mxu0 0
        %1114 = vmatpush1.bf16.msra.mxu0 0
        %1115 = vmatprep.subr.bf16.mxu0 0
        %1116 = vmatpush1.bf16.msra.mxu0 0
        %1117 = vmatprep.subr.bf16.mxu0 0
        %1118 = vmatpush1.bf16.msra.mxu0 0
        %1119 = vmatprep.subr.bf16.mxu0 0
        %1120 = vmatpush1.bf16.msra.mxu0 0
        %1121 = vmatprep.subr.bf16.mxu0 0
        %1122 = vmatpush1.bf16.msra.mxu0 0
        %1123 = vmatprep.subr.bf16.mxu0 0
        %1124 = vmatpush1.bf16.msra.mxu0 0
        %1125 = vmatprep.subr.bf16.mxu0 0
        %1126 = vmatpush1.bf16.msra.mxu0 0
        %1127 = vmatprep.subr.bf16.mxu0 0
        %1128 = vmatpush1.bf16.msra.mxu0 0
        %1129 = vmatprep.subr.bf16.mxu0 0
        %1130 = vmatpush1.bf16.msra.mxu0 0
        %1131 = vmatprep.subr.bf16.mxu0 0
        %1132 = vmatpush1.bf16.msra.mxu0 0
        %1133 = vmatprep.mubr.bf16.mxu0 0
        %1134 = vmatmul.mubr.bf16.gmra.mrb[0].mxu0 %v725
        %v1135 = vpop.f32.mrb[0].mxu0
        %v1136 = vadd.f32 %v346, %v1135
        %v1137 = vpop.f32.mrb[0].mxu0
        %v1138 = vadd.f32 %v350, %v1137
        %v1139 = vpop.f32.mrb[0].mxu0
        %v1140 = vadd.f32 %v346, %v1139
        %v1141 = vpop.f32.mrb[0].mxu0
        %v1142 = vadd.f32 %v350, %v1141
        %1143 = vmatprep.mubr.bf16.mxu0 0
        %1144 = vmatmul.mubr.bf16.gmra.mrb[0].mxu0 %v728
        %v1145 = vpop.f32.mrb[0].mxu0
        %v1146 = vadd.f32 %v346, %v1145
        %v1147 = vpop.f32.mrb[0].mxu0
        %v1148 = vadd.f32 %v350, %v1147
        %v1149 = vpop.f32.mrb[0].mxu0
        %v1150 = vadd.f32 %v346, %v1149
        %v1151 = vpop.f32.mrb[0].mxu0
        %v1152 = vadd.f32 %v350, %v1151
        %1153 = vmatprep.mubr.bf16.mxu0 0
        %1154 = vmatmul.mubr.bf16.gmra.mrb[0].mxu0 %v731
        %v1155 = vpop.f32.mrb[0].mxu0
        %v1156 = vadd.f32 %v346, %v1155
        %v1157 = vpop.f32.mrb[0].mxu0
        %v1158 = vadd.f32 %v350, %v1157
        %v1159 = vpop.f32.mrb[0].mxu0
        %v1160 = vadd.f32 %v346, %v1159
        %v1161 = vpop.f32.mrb[0].mxu0
        %v1162 = vadd.f32 %v350, %v1161
        %1163 = vmatprep.mubr.bf16.mxu0 0
        %1164 = vmatmul.mubr.bf16.gmra.mrb[0].mxu0 %v734
        %v1165 = vpop.f32.mrb[0].mxu0
        %v1166 = vadd.f32 %v346, %v1165
        %v1167 = vpop.f32.mrb[0].mxu0
        %v1168 = vadd.f32 %v350, %v1167
        %v1169 = vpop.f32.mrb[0].mxu0
        %v1170 = vadd.f32 %v346, %v1169
        %v1171 = vpop.f32.mrb[0].mxu0
        %v1172 = vadd.f32 %v350, %v1171
        %1173 = vdwg.mxu0
        %1174 = vmatprep.subr.bf16.mxu0 %v608
        %1175 = vmatpush1.bf16.msra.mxu0 %v607
        %1176 = vmatprep.subr.bf16.mxu0 %v624
        %1177 = vmatpush1.bf16.msra.mxu0 %v623
        %1178 = vmatprep.subr.bf16.mxu0 %v640
        %1179 = vmatpush1.bf16.msra.mxu0 %v639
        %1180 = vmatprep.subr.bf16.mxu0 %v656
        %1181 = vmatpush1.bf16.msra.mxu0 %v655
        %1182 = vmatprep.subr.bf16.mxu0 0
        %1183 = vmatpush1.bf16.msra.mxu0 0
        %1184 = vmatprep.subr.bf16.mxu0 0
        %1185 = vmatpush1.bf16.msra.mxu0 0
        %1186 = vmatprep.subr.bf16.mxu0 0
        %1187 = vmatpush1.bf16.msra.mxu0 0
        %1188 = vmatprep.subr.bf16.mxu0 0
        %1189 = vmatpush1.bf16.msra.mxu0 0
        %1190 = vmatprep.subr.bf16.mxu0 0
        %1191 = vmatpush1.bf16.msra.mxu0 0
        %1192 = vmatprep.subr.bf16.mxu0 0
        %1193 = vmatpush1.bf16.msra.mxu0 0
        %1194 = vmatprep.subr.bf16.mxu0 0
        %1195 = vmatpush1.bf16.msra.mxu0 0
        %1196 = vmatprep.subr.bf16.mxu0 0
        %1197 = vmatpush1.bf16.msra.mxu0 0
        %1198 = vmatprep.subr.bf16.mxu0 0
        %1199 = vmatpush1.bf16.msra.mxu0 0
        %1200 = vmatprep.subr.bf16.mxu0 0
        %1201 = vmatpush1.bf16.msra.mxu0 0
        %1202 = vmatprep.subr.bf16.mxu0 0
        %1203 = vmatpush1.bf16.msra.mxu0 0
        %1204 = vmatprep.subr.bf16.mxu0 0
        %1205 = vmatpush1.bf16.msra.mxu0 0
        %1206 = vmatprep.mubr.bf16.mxu0 0
        %1207 = vmatmul.mubr.bf16.gmra.mrb[0].mxu0 %v725
        %v1208 = vpop.f32.mrb[0].mxu0
        %v1209 = vadd.f32 %v354, %v1208
        %v1210 = vpop.f32.mrb[0].mxu0
        %v1211 = vadd.f32 %v358, %v1210
        %v1212 = vpop.f32.mrb[0].mxu0
        %v1213 = vadd.f32 %v354, %v1212
        %v1214 = vpop.f32.mrb[0].mxu0
        %v1215 = vadd.f32 %v358, %v1214
        %1216 = vmatprep.mubr.bf16.mxu0 0
        %1217 = vmatmul.mubr.bf16.gmra.mrb[0].mxu0 %v728
        %v1218 = vpop.f32.mrb[0].mxu0
        %v1219 = vadd.f32 %v354, %v1218
        %v1220 = vpop.f32.mrb[0].mxu0
        %v1221 = vadd.f32 %v358, %v1220
        %v1222 = vpop.f32.mrb[0].mxu0
        %v1223 = vadd.f32 %v354, %v1222
        %v1224 = vpop.f32.mrb[0].mxu0
        %v1225 = vadd.f32 %v358, %v1224
        %1226 = vmatprep.mubr.bf16.mxu0 0
        %1227 = vmatmul.mubr.bf16.gmra.mrb[0].mxu0 %v731
        %v1228 = vpop.f32.mrb[0].mxu0
        %v1229 = vadd.f32 %v354, %v1228
        %v1230 = vpop.f32.mrb[0].mxu0
        %v1231 = vadd.f32 %v358, %v1230
        %v1232 = vpop.f32.mrb[0].mxu0
        %v1233 = vadd.f32 %v354, %v1232
        %v1234 = vpop.f32.mrb[0].mxu0
        %v1235 = vadd.f32 %v358, %v1234
        %1236 = vmatprep.mubr.bf16.mxu0 0
        %1237 = vmatmul.mubr.bf16.gmra.mrb[0].mxu0 %v734
        %v1238 = vpop.f32.mrb[0].mxu0
        %v1239 = vadd.f32 %v354, %v1238
        %v1240 = vpop.f32.mrb[0].mxu0
        %v1241 = vadd.f32 %v358, %v1240
        %v1242 = vpop.f32.mrb[0].mxu0
        %v1243 = vadd.f32 %v354, %v1242
        %v1244 = vpop.f32.mrb[0].mxu0
        %v1245 = vadd.f32 %v358, %v1244
        %1246 = vdwg.mxu0
        %1247 = vmatprep.subr.bf16.mxu0 %v610
        %1248 = vmatpush1.bf16.msra.mxu0 %v609
        %1249 = vmatprep.subr.bf16.mxu0 %v626
        %1250 = vmatpush1.bf16.msra.mxu0 %v625
        %1251 = vmatprep.subr.bf16.mxu0 %v642
        %1252 = vmatpush1.bf16.msra.mxu0 %v641
        %1253 = vmatprep.subr.bf16.mxu0 %v658
        %1254 = vmatpush1.bf16.msra.mxu0 %v657
        %1255 = vmatprep.subr.bf16.mxu0 0
        %1256 = vmatpush1.bf16.msra.mxu0 0
        %1257 = vmatprep.subr.bf16.mxu0 0
        %1258 = vmatpush1.bf16.msra.mxu0 0
        %1259 = vmatprep.subr.bf16.mxu0 0
        %1260 = vmatpush1.bf16.msra.mxu0 0
        %1261 = vmatprep.subr.bf16.mxu0 0
        %1262 = vmatpush1.bf16.msra.mxu0 0
        %1263 = vmatprep.subr.bf16.mxu0 0
        %1264 = vmatpush1.bf16.msra.mxu0 0
        %1265 = vmatprep.subr.bf16.mxu0 0
        %1266 = vmatpush1.bf16.msra.mxu0 0
        %1267 = vmatprep.subr.bf16.mxu0 0
        %1268 = vmatpush1.bf16.msra.mxu0 0
        %1269 = vmatprep.subr.bf16.mxu0 0
        %1270 = vmatpush1.bf16.msra.mxu0 0
        %1271 = vmatprep.subr.bf16.mxu0 0
        %1272 = vmatpush1.bf16.msra.mxu0 0
        %1273 = vmatprep.subr.bf16.mxu0 0
        %1274 = vmatpush1.bf16.msra.mxu0 0
        %1275 = vmatprep.subr.bf16.mxu0 0
        %1276 = vmatpush1.bf16.msra.mxu0 0
        %1277 = vmatprep.subr.bf16.mxu0 0
        %1278 = vmatpush1.bf16.msra.mxu0 0
        %1279 = vmatprep.mubr.bf16.mxu0 0
        %1280 = vmatmul.mubr.bf16.gmra.mrb[0].mxu0 %v725
        %v1281 = vpop.f32.mrb[0].mxu0
        %v1282 = vadd.f32 %v362, %v1281
        %v1283 = vpop.f32.mrb[0].mxu0
        %v1284 = vadd.f32 %v366, %v1283
        %v1285 = vpop.f32.mrb[0].mxu0
        %v1286 = vadd.f32 %v362, %v1285
        %v1287 = vpop.f32.mrb[0].mxu0
        %v1288 = vadd.f32 %v366, %v1287
        %1289 = vmatprep.mubr.bf16.mxu0 0
        %1290 = vmatmul.mubr.bf16.gmra.mrb[0].mxu0 %v728
        %v1291 = vpop.f32.mrb[0].mxu0
        %v1292 = vadd.f32 %v362, %v1291
        %v1293 = vpop.f32.mrb[0].mxu0
        %v1294 = vadd.f32 %v366, %v1293
        %v1295 = vpop.f32.mrb[0].mxu0
        %v1296 = vadd.f32 %v362, %v1295
        %v1297 = vpop.f32.mrb[0].mxu0
        %v1298 = vadd.f32 %v366, %v1297
        %1299 = vmatprep.mubr.bf16.mxu0 0
        %1300 = vmatmul.mubr.bf16.gmra.mrb[0].mxu0 %v731
        %v1301 = vpop.f32.mrb[0].mxu0
        %v1302 = vadd.f32 %v362, %v1301
        %v1303 = vpop.f32.mrb[0].mxu0
        %v1304 = vadd.f32 %v366, %v1303
        %v1305 = vpop.f32.mrb[0].mxu0
        %v1306 = vadd.f32 %v362, %v1305
        %v1307 = vpop.f32.mrb[0].mxu0
        %v1308 = vadd.f32 %v366, %v1307
        %1309 = vmatprep.mubr.bf16.mxu0 0
        %1310 = vmatmul.mubr.bf16.gmra.mrb[0].mxu0 %v734
        %v1311 = vpop.f32.mrb[0].mxu0
        %v1312 = vadd.f32 %v362, %v1311
        %v1313 = vpop.f32.mrb[0].mxu0
        %v1314 = vadd.f32 %v366, %v1313
        %v1315 = vpop.f32.mrb[0].mxu0
        %v1316 = vadd.f32 %v362, %v1315
        %v1317 = vpop.f32.mrb[0].mxu0
        %v1318 = vadd.f32 %v366, %v1317
        %1319 = vdwg.mxu0
        %1320 = vst [vmem:[%s222] sm:$0xff] %v771
        %1321 = vst [vmem:[%s222 + $0x8] sm:$0xff] %v773
        %1322 = vst [vmem:[%s222 + $0x10] sm:$0xff] %v844
        %1323 = vst [vmem:[%s222 + $0x18] sm:$0xff] %v846
        %1324 = vst [vmem:[%s222 + $0x80] sm:$0xff] %v775
        %1325 = vst [vmem:[%s222 + $0x88] sm:$0xff] %v777
        %1326 = vst [vmem:[%s222 + $0x90] sm:$0xff] %v848
        %1327 = vst [vmem:[%s222 + $0x98] sm:$0xff] %v850
        %1328 = vst [vmem:[%s222 + $0x100] sm:$0xff] %v781
        %1329 = vst [vmem:[%s222 + $0x108] sm:$0xff] %v783
        %1330 = vst [vmem:[%s222 + $0x110] sm:$0xff] %v854
        %1331 = vst [vmem:[%s222 + $0x118] sm:$0xff] %v856
        %1332 = vst [vmem:[%s222 + $0x180] sm:$0xff] %v785
        %1333 = vst [vmem:[%s222 + $0x188] sm:$0xff] %v787
        %1334 = vst [vmem:[%s222 + $0x190] sm:$0xff] %v858
        %1335 = vst [vmem:[%s222 + $0x198] sm:$0xff] %v860
        %1336 = vst [vmem:[%s222 + $0x200] sm:$0xff] %v791
        %1337 = vst [vmem:[%s222 + $0x208] sm:$0xff] %v793
        %1338 = vst [vmem:[%s222 + $0x210] sm:$0xff] %v864
        %1339 = vst [vmem:[%s222 + $0x218] sm:$0xff] %v866
        %1340 = vst [vmem:[%s222 + $0x280] sm:$0xff] %v795
        %1341 = vst [vmem:[%s222 + $0x288] sm:$0xff] %v797
        %1342 = vst [vmem:[%s222 + $0x290] sm:$0xff] %v868
        %1343 = vst [vmem:[%s222 + $0x298] sm:$0xff] %v870
        %1344 = vst [vmem:[%s222 + $0x300] sm:$0xff] %v801
        %1345 = vst [vmem:[%s222 + $0x308] sm:$0xff] %v803
        %1346 = vst [vmem:[%s222 + $0x310] sm:$0xff] %v874
        %1347 = vst [vmem:[%s222 + $0x318] sm:$0xff] %v876
        %1348 = vst [vmem:[%s222 + $0x380] sm:$0xff] %v805
        %1349 = vst [vmem:[%s222 + $0x388] sm:$0xff] %v807
        %1350 = vst [vmem:[%s222 + $0x390] sm:$0xff] %v878
        %1351 = vst [vmem:[%s222 + $0x398] sm:$0xff] %v880
        %s1352 = scalar_lea.vmem %s222, 32 [#allocation6]
        %1353 = vst [vmem:[%s1352] sm:$0xff] %v917
        %1354 = vst [vmem:[%s1352 + $0x8] sm:$0xff] %v919
        %1355 = vst [vmem:[%s1352 + $0x10] sm:$0xff] %v990
        %1356 = vst [vmem:[%s1352 + $0x18] sm:$0xff] %v992
        %1357 = vst [vmem:[%s1352 + $0x80] sm:$0xff] %v921
        %1358 = vst [vmem:[%s1352 + $0x88] sm:$0xff] %v923
        %1359 = vst [vmem:[%s1352 + $0x90] sm:$0xff] %v994
        %1360 = vst [vmem:[%s1352 + $0x98] sm:$0xff] %v996
        %1361 = vst [vmem:[%s1352 + $0x100] sm:$0xff] %v927
        %1362 = vst [vmem:[%s1352 + $0x108] sm:$0xff] %v929
        %1363 = vst [vmem:[%s1352 + $0x110] sm:$0xff] %v1000
        %1364 = vst [vmem:[%s1352 + $0x118] sm:$0xff] %v1002
        %1365 = vst [vmem:[%s1352 + $0x180] sm:$0xff] %v931
        %1366 = vst [vmem:[%s1352 + $0x188] sm:$0xff] %v933
        %1367 = vst [vmem:[%s1352 + $0x190] sm:$0xff] %v1004
        %1368 = vst [vmem:[%s1352 + $0x198] sm:$0xff] %v1006
        %1369 = vst [vmem:[%s1352 + $0x200] sm:$0xff] %v937
        %1370 = vst [vmem:[%s1352 + $0x208] sm:$0xff] %v939
        %1371 = vst [vmem:[%s1352 + $0x210] sm:$0xff] %v1010
        %1372 = vst [vmem:[%s1352 + $0x218] sm:$0xff] %v1012
        %1373 = vst [vmem:[%s1352 + $0x280] sm:$0xff] %v941
        %1374 = vst [vmem:[%s1352 + $0x288] sm:$0xff] %v943
        %1375 = vst [vmem:[%s1352 + $0x290] sm:$0xff] %v1014
        %1376 = vst [vmem:[%s1352 + $0x298] sm:$0xff] %v1016
        %1377 = vst [vmem:[%s1352 + $0x300] sm:$0xff] %v947
        %1378 = vst [vmem:[%s1352 + $0x308] sm:$0xff] %v949
        %1379 = vst [vmem:[%s1352 + $0x310] sm:$0xff] %v1020
        %1380 = vst [vmem:[%s1352 + $0x318] sm:$0xff] %v1022
        %1381 = vst [vmem:[%s1352 + $0x380] sm:$0xff] %v951
        %1382 = vst [vmem:[%s1352 + $0x388] sm:$0xff] %v953
        %1383 = vst [vmem:[%s1352 + $0x390] sm:$0xff] %v1024
        %1384 = vst [vmem:[%s1352 + $0x398] sm:$0xff] %v1026
        %s1385 = scalar_lea.vmem %s222, 64 [#allocation6]
        %1386 = vst [vmem:[%s1385] sm:$0xff] %v1063
        %1387 = vst [vmem:[%s1385 + $0x8] sm:$0xff] %v1065
        %1388 = vst [vmem:[%s1385 + $0x10] sm:$0xff] %v1136
        %1389 = vst [vmem:[%s1385 + $0x18] sm:$0xff] %v1138
        %1390 = vst [vmem:[%s1385 + $0x80] sm:$0xff] %v1067
        %1391 = vst [vmem:[%s1385 + $0x88] sm:$0xff] %v1069
        %1392 = vst [vmem:[%s1385 + $0x90] sm:$0xff] %v1140
        %1393 = vst [vmem:[%s1385 + $0x98] sm:$0xff] %v1142
        %1394 = vst [vmem:[%s1385 + $0x100] sm:$0xff] %v1073
        %1395 = vst [vmem:[%s1385 + $0x108] sm:$0xff] %v1075
        %1396 = vst [vmem:[%s1385 + $0x110] sm:$0xff] %v1146
        %1397 = vst [vmem:[%s1385 + $0x118] sm:$0xff] %v1148
        %1398 = vst [vmem:[%s1385 + $0x180] sm:$0xff] %v1077
        %1399 = vst [vmem:[%s1385 + $0x188] sm:$0xff] %v1079
        %1400 = vst [vmem:[%s1385 + $0x190] sm:$0xff] %v1150
        %1401 = vst [vmem:[%s1385 + $0x198] sm:$0xff] %v1152
        %1402 = vst [vmem:[%s1385 + $0x200] sm:$0xff] %v1083
        %1403 = vst [vmem:[%s1385 + $0x208] sm:$0xff] %v1085
        %1404 = vst [vmem:[%s1385 + $0x210] sm:$0xff] %v1156
        %1405 = vst [vmem:[%s1385 + $0x218] sm:$0xff] %v1158
        %1406 = vst [vmem:[%s1385 + $0x280] sm:$0xff] %v1087
        %1407 = vst [vmem:[%s1385 + $0x288] sm:$0xff] %v1089
        %1408 = vst [vmem:[%s1385 + $0x290] sm:$0xff] %v1160
        %1409 = vst [vmem:[%s1385 + $0x298] sm:$0xff] %v1162
        %1410 = vst [vmem:[%s1385 + $0x300] sm:$0xff] %v1093
        %1411 = vst [vmem:[%s1385 + $0x308] sm:$0xff] %v1095
        %1412 = vst [vmem:[%s1385 + $0x310] sm:$0xff] %v1166
        %1413 = vst [vmem:[%s1385 + $0x318] sm:$0xff] %v1168
        %1414 = vst [vmem:[%s1385 + $0x380] sm:$0xff] %v1097
        %1415 = vst [vmem:[%s1385 + $0x388] sm:$0xff] %v1099
        %1416 = vst [vmem:[%s1385 + $0x390] sm:$0xff] %v1170
        %1417 = vst [vmem:[%s1385 + $0x398] sm:$0xff] %v1172
        %s1418 = scalar_lea.vmem %s222, 96 [#allocation6]
        %1419 = vst [vmem:[%s1418] sm:$0xff] %v1209
        %1420 = vst [vmem:[%s1418 + $0x8] sm:$0xff] %v1211
        %1421 = vst [vmem:[%s1418 + $0x10] sm:$0xff] %v1282
        %1422 = vst [vmem:[%s1418 + $0x18] sm:$0xff] %v1284
        %1423 = vst [vmem:[%s1418 + $0x80] sm:$0xff] %v1213
        %1424 = vst [vmem:[%s1418 + $0x88] sm:$0xff] %v1215
        %1425 = vst [vmem:[%s1418 + $0x90] sm:$0xff] %v1286
        %1426 = vst [vmem:[%s1418 + $0x98] sm:$0xff] %v1288
        %1427 = vst [vmem:[%s1418 + $0x100] sm:$0xff] %v1219
        %1428 = vst [vmem:[%s1418 + $0x108] sm:$0xff] %v1221
        %1429 = vst [vmem:[%s1418 + $0x110] sm:$0xff] %v1292
        %1430 = vst [vmem:[%s1418 + $0x118] sm:$0xff] %v1294
        %1431 = vst [vmem:[%s1418 + $0x180] sm:$0xff] %v1223
        %1432 = vst [vmem:[%s1418 + $0x188] sm:$0xff] %v1225
        %1433 = vst [vmem:[%s1418 + $0x190] sm:$0xff] %v1296
        %1434 = vst [vmem:[%s1418 + $0x198] sm:$0xff] %v1298
        %1435 = vst [vmem:[%s1418 + $0x200] sm:$0xff] %v1229
        %1436 = vst [vmem:[%s1418 + $0x208] sm:$0xff] %v1231
        %1437 = vst [vmem:[%s1418 + $0x210] sm:$0xff] %v1302
        %1438 = vst [vmem:[%s1418 + $0x218] sm:$0xff] %v1304
        %1439 = vst [vmem:[%s1418 + $0x280] sm:$0xff] %v1233
        %1440 = vst [vmem:[%s1418 + $0x288] sm:$0xff] %v1235
        %1441 = vst [vmem:[%s1418 + $0x290] sm:$0xff] %v1306
        %1442 = vst [vmem:[%s1418 + $0x298] sm:$0xff] %v1308
        %1443 = vst [vmem:[%s1418 + $0x300] sm:$0xff] %v1239
        %1444 = vst [vmem:[%s1418 + $0x308] sm:$0xff] %v1241
        %1445 = vst [vmem:[%s1418 + $0x310] sm:$0xff] %v1312
        %1446 = vst [vmem:[%s1418 + $0x318] sm:$0xff] %v1314
        %1447 = vst [vmem:[%s1418 + $0x380] sm:$0xff] %v1243
        %1448 = vst [vmem:[%s1418 + $0x388] sm:$0xff] %v1245
        %1449 = vst [vmem:[%s1418 + $0x390] sm:$0xff] %v1316
        %1450 = vst [vmem:[%s1418 + $0x398] sm:$0xff] %v1318
        %s1451 = sand.u32 %s101, 1
        %s1452 = sand.u32 %s101, 1
        %s1453 = smul.addr %s1452, 1024
        %s1454 = scalar_lea.vmem [#allocation6], %s1453
        // Predicated region
        $region41: #{model_forward.1} parent=31 // pred_check
          %p1455 = pneg %p111
        $region42: #{model_forward.1} parent=31 // pred_check_branch
          %1457 = sbr.rel (%p1455) target = $region44
        $region43: #{model_forward.1} parent=31 // pred_region
          %s1458 = smul.u32 4, %s20
          %s1459 = smul.addr %s1458, 4
          %s1460 = smul.addr %s1459, 8
          %s1461 = scalar_lea.vmem %s3, %s1460
          // Predicated region
          $region45: #{model_forward.1} parent=43 // pred_check
            _
          $region46: #{model_forward.1} parent=43 // pred_check_branch
            %1463 = sbr.rel (0) target = $region48
          $region47: #{model_forward.1} parent=43 // pred_region
            // Predicated region
            $region49: #{model_forward.1} parent=47 // pred_check
              _
            $region50: #{model_forward.1} parent=47 // pred_check_branch
              %1465 = sbr.rel (0) target = $region52
            $region51: #{model_forward.1} parent=47 // pred_region
              loop: start=0, step=1, limit=1
              $region53: #{model_forward.1} parent=51 // loop_pre_header
                _
              $region54: #{model_forward.1} parent=51 // loop_header
                %s1467 = sphi 0, %s1471
                %p1468 = scmp.ge.s32.totalorder %s1467, 1
                %s1472 = sphi %s1454, %s1454
                %s1473 = sphi %s1461, %s1461
              $region55: #{model_forward.1} parent=51 // loop_header_branch
                %1470 = sbr.rel (%p1468) target = $region59
              $region56: #{model_forward.1} parent=51 // loop_body
                %v1474 = vld [vmem:[%s1472] sm:$0xff]
                %1475 = vst [vmem:[%s1473] sm:$0xff] %v1474
                %v1476 = vld [vmem:[%s1472 + $0x8] sm:$0xff]
                %1477 = vst [vmem:[%s1473 + $0x8] sm:$0xff] %v1476
                %v1478 = vld [vmem:[%s1472 + $0x10] sm:$0xff]
                %1479 = vst [vmem:[%s1473 + $0x10] sm:$0xff] %v1478
                %v1480 = vld [vmem:[%s1472 + $0x18] sm:$0xff]
                %1481 = vst [vmem:[%s1473 + $0x18] sm:$0xff] %v1480
                %v1482 = vld [vmem:[%s1472 + $0x20] sm:$0xff]
                %1483 = vst [vmem:[%s1473 + $0x20] sm:$0xff] %v1482
                %v1484 = vld [vmem:[%s1472 + $0x28] sm:$0xff]
                %1485 = vst [vmem:[%s1473 + $0x28] sm:$0xff] %v1484
                %v1486 = vld [vmem:[%s1472 + $0x30] sm:$0xff]
                %1487 = vst [vmem:[%s1473 + $0x30] sm:$0xff] %v1486
                %v1488 = vld [vmem:[%s1472 + $0x38] sm:$0xff]
                %1489 = vst [vmem:[%s1473 + $0x38] sm:$0xff] %v1488
                %v1490 = vld [vmem:[%s1472 + $0x40] sm:$0xff]
                %1491 = vst [vmem:[%s1473 + $0x40] sm:$0xff] %v1490
                %v1492 = vld [vmem:[%s1472 + $0x48] sm:$0xff]
                %1493 = vst [vmem:[%s1473 + $0x48] sm:$0xff] %v1492
                %v1494 = vld [vmem:[%s1472 + $0x50] sm:$0xff]
                %1495 = vst [vmem:[%s1473 + $0x50] sm:$0xff] %v1494
                %v1496 = vld [vmem:[%s1472 + $0x58] sm:$0xff]
                %1497 = vst [vmem:[%s1473 + $0x58] sm:$0xff] %v1496
                %v1498 = vld [vmem:[%s1472 + $0x60] sm:$0xff]
                %1499 = vst [vmem:[%s1473 + $0x60] sm:$0xff] %v1498
                %v1500 = vld [vmem:[%s1472 + $0x68] sm:$0xff]
                %1501 = vst [vmem:[%s1473 + $0x68] sm:$0xff] %v1500
                %v1502 = vld [vmem:[%s1472 + $0x70] sm:$0xff]
                %1503 = vst [vmem:[%s1473 + $0x70] sm:$0xff] %v1502
                %v1504 = vld [vmem:[%s1472 + $0x78] sm:$0xff]
                %1505 = vst [vmem:[%s1473 + $0x78] sm:$0xff] %v1504
                %v1506 = vld [vmem:[%s1472 + $0x80] sm:$0xff]
                %1507 = vst [vmem:[%s1473 + $0x100] sm:$0xff] %v1506
                %v1508 = vld [vmem:[%s1472 + $0x88] sm:$0xff]
                %1509 = vst [vmem:[%s1473 + $0x108] sm:$0xff] %v1508
                %v1510 = vld [vmem:[%s1472 + $0x90] sm:$0xff]
                %1511 = vst [vmem:[%s1473 + $0x110] sm:$0xff] %v1510
                %v1512 = vld [vmem:[%s1472 + $0x98] sm:$0xff]
                %1513 = vst [vmem:[%s1473 + $0x118] sm:$0xff] %v1512
                %v1514 = vld [vmem:[%s1472 + $0xa0] sm:$0xff]
                %1515 = vst [vmem:[%s1473 + $0x120] sm:$0xff] %v1514
                %v1516 = vld [vmem:[%s1472 + $0xa8] sm:$0xff]
                %1517 = vst [vmem:[%s1473 + $0x128] sm:$0xff] %v1516
                %v1518 = vld [vmem:[%s1472 + $0xb0] sm:$0xff]
                %1519 = vst [vmem:[%s1473 + $0x130] sm:$0xff] %v1518
                %v1520 = vld [vmem:[%s1472 + $0xb8] sm:$0xff]
                %1521 = vst [vmem:[%s1473 + $0x138] sm:$0xff] %v1520
                %v1522 = vld [vmem:[%s1472 + $0xc0] sm:$0xff]
                %1523 = vst [vmem:[%s1473 + $0x140] sm:$0xff] %v1522
                %v1524 = vld [vmem:[%s1472 + $0xc8] sm:$0xff]
                %1525 = vst [vmem:[%s1473 + $0x148] sm:$0xff] %v1524
                %v1526 = vld [vmem:[%s1472 + $0xd0] sm:$0xff]
                %1527 = vst [vmem:[%s1473 + $0x150] sm:$0xff] %v1526
                %v1528 = vld [vmem:[%s1472 + $0xd8] sm:$0xff]
                %1529 = vst [vmem:[%s1473 + $0x158] sm:$0xff] %v1528
                %v1530 = vld [vmem:[%s1472 + $0xe0] sm:$0xff]
                %1531 = vst [vmem:[%s1473 + $0x160] sm:$0xff] %v1530
                %v1532 = vld [vmem:[%s1472 + $0xe8] sm:$0xff]
                %1533 = vst [vmem:[%s1473 + $0x168] sm:$0xff] %v1532
                %v1534 = vld [vmem:[%s1472 + $0xf0] sm:$0xff]
                %1535 = vst [vmem:[%s1473 + $0x170] sm:$0xff] %v1534
                %v1536 = vld [vmem:[%s1472 + $0xf8] sm:$0xff]
                %1537 = vst [vmem:[%s1473 + $0x178] sm:$0xff] %v1536
                %v1538 = vld [vmem:[%s1472 + $0x100] sm:$0xff]
                %1539 = vst [vmem:[%s1473 + $0x200] sm:$0xff] %v1538
                %v1540 = vld [vmem:[%s1472 + $0x108] sm:$0xff]
                %1541 = vst [vmem:[%s1473 + $0x208] sm:$0xff] %v1540
                %v1542 = vld [vmem:[%s1472 + $0x110] sm:$0xff]
                %1543 = vst [vmem:[%s1473 + $0x210] sm:$0xff] %v1542
                %v1544 = vld [vmem:[%s1472 + $0x118] sm:$0xff]
                %1545 = vst [vmem:[%s1473 + $0x218] sm:$0xff] %v1544
                %v1546 = vld [vmem:[%s1472 + $0x120] sm:$0xff]
                %1547 = vst [vmem:[%s1473 + $0x220] sm:$0xff] %v1546
                %v1548 = vld [vmem:[%s1472 + $0x128] sm:$0xff]
                %1549 = vst [vmem:[%s1473 + $0x228] sm:$0xff] %v1548
                %v1550 = vld [vmem:[%s1472 + $0x130] sm:$0xff]
                %1551 = vst [vmem:[%s1473 + $0x230] sm:$0xff] %v1550
                %v1552 = vld [vmem:[%s1472 + $0x138] sm:$0xff]
                %1553 = vst [vmem:[%s1473 + $0x238] sm:$0xff] %v1552
                %v1554 = vld [vmem:[%s1472 + $0x140] sm:$0xff]
                %1555 = vst [vmem:[%s1473 + $0x240] sm:$0xff] %v1554
                %v1556 = vld [vmem:[%s1472 + $0x148] sm:$0xff]
                %1557 = vst [vmem:[%s1473 + $0x248] sm:$0xff] %v1556
                %v1558 = vld [vmem:[%s1472 + $0x150] sm:$0xff]
                %1559 = vst [vmem:[%s1473 + $0x250] sm:$0xff] %v1558
                %v1560 = vld [vmem:[%s1472 + $0x158] sm:$0xff]
                %1561 = vst [vmem:[%s1473 + $0x258] sm:$0xff] %v1560
                %v1562 = vld [vmem:[%s1472 + $0x160] sm:$0xff]
                %1563 = vst [vmem:[%s1473 + $0x260] sm:$0xff] %v1562
                %v1564 = vld [vmem:[%s1472 + $0x168] sm:$0xff]
                %1565 = vst [vmem:[%s1473 + $0x268] sm:$0xff] %v1564
                %v1566 = vld [vmem:[%s1472 + $0x170] sm:$0xff]
                %1567 = vst [vmem:[%s1473 + $0x270] sm:$0xff] %v1566
                %v1568 = vld [vmem:[%s1472 + $0x178] sm:$0xff]
                %1569 = vst [vmem:[%s1473 + $0x278] sm:$0xff] %v1568
                %v1570 = vld [vmem:[%s1472 + $0x180] sm:$0xff]
                %1571 = vst [vmem:[%s1473 + $0x300] sm:$0xff] %v1570
                %v1572 = vld [vmem:[%s1472 + $0x188] sm:$0xff]
                %1573 = vst [vmem:[%s1473 + $0x308] sm:$0xff] %v1572
                %v1574 = vld [vmem:[%s1472 + $0x190] sm:$0xff]
                %1575 = vst [vmem:[%s1473 + $0x310] sm:$0xff] %v1574
                %v1576 = vld [vmem:[%s1472 + $0x198] sm:$0xff]
                %1577 = vst [vmem:[%s1473 + $0x318] sm:$0xff] %v1576
                %v1578 = vld [vmem:[%s1472 + $0x1a0] sm:$0xff]
                %1579 = vst [vmem:[%s1473 + $0x320] sm:$0xff] %v1578
                %v1580 = vld [vmem:[%s1472 + $0x1a8] sm:$0xff]
                %1581 = vst [vmem:[%s1473 + $0x328] sm:$0xff] %v1580
                %v1582 = vld [vmem:[%s1472 + $0x1b0] sm:$0xff]
                %1583 = vst [vmem:[%s1473 + $0x330] sm:$0xff] %v1582
                %v1584 = vld [vmem:[%s1472 + $0x1b8] sm:$0xff]
                %1585 = vst [vmem:[%s1473 + $0x338] sm:$0xff] %v1584
                %v1586 = vld [vmem:[%s1472 + $0x1c0] sm:$0xff]
                %1587 = vst [vmem:[%s1473 + $0x340] sm:$0xff] %v1586
                %v1588 = vld [vmem:[%s1472 + $0x1c8] sm:$0xff]
                %1589 = vst [vmem:[%s1473 + $0x348] sm:$0xff] %v1588
                %v1590 = vld [vmem:[%s1472 + $0x1d0] sm:$0xff]
                %1591 = vst [vmem:[%s1473 + $0x350] sm:$0xff] %v1590
                %v1592 = vld [vmem:[%s1472 + $0x1d8] sm:$0xff]
                %1593 = vst [vmem:[%s1473 + $0x358] sm:$0xff] %v1592
                %v1594 = vld [vmem:[%s1472 + $0x1e0] sm:$0xff]
                %1595 = vst [vmem:[%s1473 + $0x360] sm:$0xff] %v1594
                %v1596 = vld [vmem:[%s1472 + $0x1e8] sm:$0xff]
                %1597 = vst [vmem:[%s1473 + $0x368] sm:$0xff] %v1596
                %v1598 = vld [vmem:[%s1472 + $0x1f0] sm:$0xff]
                %1599 = vst [vmem:[%s1473 + $0x370] sm:$0xff] %v1598
                %v1600 = vld [vmem:[%s1472 + $0x1f8] sm:$0xff]
                %1601 = vst [vmem:[%s1473 + $0x378] sm:$0xff] %v1600
                %v1602 = vld [vmem:[%s1472 + $0x200] sm:$0xff]
                %1603 = vst [vmem:[%s1473 + $0x400] sm:$0xff] %v1602
                %v1604 = vld [vmem:[%s1472 + $0x208] sm:$0xff]
                %1605 = vst [vmem:[%s1473 + $0x408] sm:$0xff] %v1604
                %v1606 = vld [vmem:[%s1472 + $0x210] sm:$0xff]
                %1607 = vst [vmem:[%s1473 + $0x410] sm:$0xff] %v1606
                %v1608 = vld [vmem:[%s1472 + $0x218] sm:$0xff]
                %1609 = vst [vmem:[%s1473 + $0x418] sm:$0xff] %v1608
                %v1610 = vld [vmem:[%s1472 + $0x220] sm:$0xff]
                %1611 = vst [vmem:[%s1473 + $0x420] sm:$0xff] %v1610
                %v1612 = vld [vmem:[%s1472 + $0x228] sm:$0xff]
                %1613 = vst [vmem:[%s1473 + $0x428] sm:$0xff] %v1612
                %v1614 = vld [vmem:[%s1472 + $0x230] sm:$0xff]
                %1615 = vst [vmem:[%s1473 + $0x430] sm:$0xff] %v1614
                %v1616 = vld [vmem:[%s1472 + $0x238] sm:$0xff]
                %1617 = vst [vmem:[%s1473 + $0x438] sm:$0xff] %v1616
                %v1618 = vld [vmem:[%s1472 + $0x240] sm:$0xff]
                %1619 = vst [vmem:[%s1473 + $0x440] sm:$0xff] %v1618
                %v1620 = vld [vmem:[%s1472 + $0x248] sm:$0xff]
                %1621 = vst [vmem:[%s1473 + $0x448] sm:$0xff] %v1620
                %v1622 = vld [vmem:[%s1472 + $0x250] sm:$0xff]
                %1623 = vst [vmem:[%s1473 + $0x450] sm:$0xff] %v1622
                %v1624 = vld [vmem:[%s1472 + $0x258] sm:$0xff]
                %1625 = vst [vmem:[%s1473 + $0x458] sm:$0xff] %v1624
                %v1626 = vld [vmem:[%s1472 + $0x260] sm:$0xff]
                %1627 = vst [vmem:[%s1473 + $0x460] sm:$0xff] %v1626
                %v1628 = vld [vmem:[%s1472 + $0x268] sm:$0xff]
                %1629 = vst [vmem:[%s1473 + $0x468] sm:$0xff] %v1628
                %v1630 = vld [vmem:[%s1472 + $0x270] sm:$0xff]
                %1631 = vst [vmem:[%s1473 + $0x470] sm:$0xff] %v1630
                %v1632 = vld [vmem:[%s1472 + $0x278] sm:$0xff]
                %1633 = vst [vmem:[%s1473 + $0x478] sm:$0xff] %v1632
                %v1634 = vld [vmem:[%s1472 + $0x280] sm:$0xff]
                %1635 = vst [vmem:[%s1473 + $0x500] sm:$0xff] %v1634
                %v1636 = vld [vmem:[%s1472 + $0x288] sm:$0xff]
                %1637 = vst [vmem:[%s1473 + $0x508] sm:$0xff] %v1636
                %v1638 = vld [vmem:[%s1472 + $0x290] sm:$0xff]
                %1639 = vst [vmem:[%s1473 + $0x510] sm:$0xff] %v1638
                %v1640 = vld [vmem:[%s1472 + $0x298] sm:$0xff]
                %1641 = vst [vmem:[%s1473 + $0x518] sm:$0xff] %v1640
                %v1642 = vld [vmem:[%s1472 + $0x2a0] sm:$0xff]
                %1643 = vst [vmem:[%s1473 + $0x520] sm:$0xff] %v1642
                %v1644 = vld [vmem:[%s1472 + $0x2a8] sm:$0xff]
                %1645 = vst [vmem:[%s1473 + $0x528] sm:$0xff] %v1644
                %v1646 = vld [vmem:[%s1472 + $0x2b0] sm:$0xff]
                %1647 = vst [vmem:[%s1473 + $0x530] sm:$0xff] %v1646
                %v1648 = vld [vmem:[%s1472 + $0x2b8] sm:$0xff]
                %1649 = vst [vmem:[%s1473 + $0x538] sm:$0xff] %v1648
                %v1650 = vld [vmem:[%s1472 + $0x2c0] sm:$0xff]
                %1651 = vst [vmem:[%s1473 + $0x540] sm:$0xff] %v1650
                %v1652 = vld [vmem:[%s1472 + $0x2c8] sm:$0xff]
                %1653 = vst [vmem:[%s1473 + $0x548] sm:$0xff] %v1652
                %v1654 = vld [vmem:[%s1472 + $0x2d0] sm:$0xff]
                %1655 = vst [vmem:[%s1473 + $0x550] sm:$0xff] %v1654
                %v1656 = vld [vmem:[%s1472 + $0x2d8] sm:$0xff]
                %1657 = vst [vmem:[%s1473 + $0x558] sm:$0xff] %v1656
                %v1658 = vld [vmem:[%s1472 + $0x2e0] sm:$0xff]
                %1659 = vst [vmem:[%s1473 + $0x560] sm:$0xff] %v1658
                %v1660 = vld [vmem:[%s1472 + $0x2e8] sm:$0xff]
                %1661 = vst [vmem:[%s1473 + $0x568] sm:$0xff] %v1660
                %v1662 = vld [vmem:[%s1472 + $0x2f0] sm:$0xff]
                %1663 = vst [vmem:[%s1473 + $0x570] sm:$0xff] %v1662
                %v1664 = vld [vmem:[%s1472 + $0x2f8] sm:$0xff]
                %1665 = vst [vmem:[%s1473 + $0x578] sm:$0xff] %v1664
                %v1666 = vld [vmem:[%s1472 + $0x300] sm:$0xff]
                %1667 = vst [vmem:[%s1473 + $0x600] sm:$0xff] %v1666
                %v1668 = vld [vmem:[%s1472 + $0x308] sm:$0xff]
                %1669 = vst [vmem:[%s1473 + $0x608] sm:$0xff] %v1668
                %v1670 = vld [vmem:[%s1472 + $0x310] sm:$0xff]
                %1671 = vst [vmem:[%s1473 + $0x610] sm:$0xff] %v1670
                %v1672 = vld [vmem:[%s1472 + $0x318] sm:$0xff]
                %1673 = vst [vmem:[%s1473 + $0x618] sm:$0xff] %v1672
                %v1674 = vld [vmem:[%s1472 + $0x320] sm:$0xff]
                %1675 = vst [vmem:[%s1473 + $0x620] sm:$0xff] %v1674
                %v1676 = vld [vmem:[%s1472 + $0x328] sm:$0xff]
                %1677 = vst [vmem:[%s1473 + $0x628] sm:$0xff] %v1676
                %v1678 = vld [vmem:[%s1472 + $0x330] sm:$0xff]
                %1679 = vst [vmem:[%s1473 + $0x630] sm:$0xff] %v1678
                %v1680 = vld [vmem:[%s1472 + $0x338] sm:$0xff]
                %1681 = vst [vmem:[%s1473 + $0x638] sm:$0xff] %v1680
                %v1682 = vld [vmem:[%s1472 + $0x340] sm:$0xff]
                %1683 = vst [vmem:[%s1473 + $0x640] sm:$0xff] %v1682
                %v1684 = vld [vmem:[%s1472 + $0x348] sm:$0xff]
                %1685 = vst [vmem:[%s1473 + $0x648] sm:$0xff] %v1684
                %v1686 = vld [vmem:[%s1472 + $0x350] sm:$0xff]
                %1687 = vst [vmem:[%s1473 + $0x650] sm:$0xff] %v1686
                %v1688 = vld [vmem:[%s1472 + $0x358] sm:$0xff]
                %1689 = vst [vmem:[%s1473 + $0x658] sm:$0xff] %v1688
                %v1690 = vld [vmem:[%s1472 + $0x360] sm:$0xff]
                %1691 = vst [vmem:[%s1473 + $0x660] sm:$0xff] %v1690
                %v1692 = vld [vmem:[%s1472 + $0x368] sm:$0xff]
                %1693 = vst [vmem:[%s1473 + $0x668] sm:$0xff] %v1692
                %v1694 = vld [vmem:[%s1472 + $0x370] sm:$0xff]
                %1695 = vst [vmem:[%s1473 + $0x670] sm:$0xff] %v1694
                %v1696 = vld [vmem:[%s1472 + $0x378] sm:$0xff]
                %1697 = vst [vmem:[%s1473 + $0x678] sm:$0xff] %v1696
                %v1698 = vld [vmem:[%s1472 + $0x380] sm:$0xff]
                %1699 = vst [vmem:[%s1473 + $0x700] sm:$0xff] %v1698
                %v1700 = vld [vmem:[%s1472 + $0x388] sm:$0xff]
                %1701 = vst [vmem:[%s1473 + $0x708] sm:$0xff] %v1700
                %v1702 = vld [vmem:[%s1472 + $0x390] sm:$0xff]
                %1703 = vst [vmem:[%s1473 + $0x710] sm:$0xff] %v1702
                %v1704 = vld [vmem:[%s1472 + $0x398] sm:$0xff]
                %1705 = vst [vmem:[%s1473 + $0x718] sm:$0xff] %v1704
                %v1706 = vld [vmem:[%s1472 + $0x3a0] sm:$0xff]
                %1707 = vst [vmem:[%s1473 + $0x720] sm:$0xff] %v1706
                %v1708 = vld [vmem:[%s1472 + $0x3a8] sm:$0xff]
                %1709 = vst [vmem:[%s1473 + $0x728] sm:$0xff] %v1708
                %v1710 = vld [vmem:[%s1472 + $0x3b0] sm:$0xff]
                %1711 = vst [vmem:[%s1473 + $0x730] sm:$0xff] %v1710
                %v1712 = vld [vmem:[%s1472 + $0x3b8] sm:$0xff]
                %1713 = vst [vmem:[%s1473 + $0x738] sm:$0xff] %v1712
                %v1714 = vld [vmem:[%s1472 + $0x3c0] sm:$0xff]
                %1715 = vst [vmem:[%s1473 + $0x740] sm:$0xff] %v1714
                %v1716 = vld [vmem:[%s1472 + $0x3c8] sm:$0xff]
                %1717 = vst [vmem:[%s1473 + $0x748] sm:$0xff] %v1716
                %v1718 = vld [vmem:[%s1472 + $0x3d0] sm:$0xff]
                %1719 = vst [vmem:[%s1473 + $0x750] sm:$0xff] %v1718
                %v1720 = vld [vmem:[%s1472 + $0x3d8] sm:$0xff]
                %1721 = vst [vmem:[%s1473 + $0x758] sm:$0xff] %v1720
                %v1722 = vld [vmem:[%s1472 + $0x3e0] sm:$0xff]
                %1723 = vst [vmem:[%s1473 + $0x760] sm:$0xff] %v1722
                %v1724 = vld [vmem:[%s1472 + $0x3e8] sm:$0xff]
                %1725 = vst [vmem:[%s1473 + $0x768] sm:$0xff] %v1724
                %v1726 = vld [vmem:[%s1472 + $0x3f0] sm:$0xff]
                %1727 = vst [vmem:[%s1473 + $0x770] sm:$0xff] %v1726
                %v1728 = vld [vmem:[%s1472 + $0x3f8] sm:$0xff]
                %1729 = vst [vmem:[%s1473 + $0x778] sm:$0xff] %v1728
              $region57: #{model_forward.1} parent=51 // loop_footer
                %s1471 = sadd.s32 1, %s1467
              $region58: #{model_forward.1} parent=51 // loop_footer_branch
                %1466 = sbr.rel target = $region54
              $region59: #{model_forward.1} parent=51 // loop_exit
                _
            $region52: #{model_forward.1} parent=47 // pred_fallthru
              _
            // Predicated region
            $region60: #{model_forward.1} parent=47 // pred_check
              _
            $region61: #{model_forward.1} parent=47 // pred_check_branch
              %1731 = sbr.rel target = $region63
            $region62: #{model_forward.1} parent=47 // pred_region
              _
            $region63: #{model_forward.1} parent=47 // pred_fallthru
              _
          $region48: #{model_forward.1} parent=43 // pred_fallthru
            _
          %1732 = vnop
        $region44: #{model_forward.1} parent=31 // pred_fallthru
          _
      $region32: #{model_forward.1} parent=5 // pred_fallthru
        _
      %p1733 = scmp.le.s32.totalorder 2, %s15
      // Predicated region
      $region64: #{model_forward.1} parent=5 // pred_check
        %p1734 = pneg %p1733
      $region65: #{model_forward.1} parent=5 // pred_check_branch
        %1736 = sbr.rel (%p1734) target = $region67
      $region66: #{model_forward.1} parent=5 // pred_region
        %s1737 = ssub.s32 %s15, 2
        // Predicated region
        $region68: #{model_forward.1} parent=66 // pred_check
          %p1738 = pneg %p117
        $region69: #{model_forward.1} parent=66 // pred_check_branch
          %1740 = sbr.rel (%p1738) target = $region71
        $region70: #{model_forward.1} parent=66 // pred_region
          %s1741 = sand.u32 %s102, 1
          %s1742 = sand.u32 %s102, 1
          %s1743 = smul.addr %s1742, 1024
          %s1744 = scalar_lea.vmem [#allocation6], %s1743
        $region71: #{model_forward.1} parent=66 // pred_fallthru
          _
      $region67: #{model_forward.1} parent=5 // pred_fallthru
        _
    $region6: #{model_forward.1} parent=1 // loop_footer
      %s19 = sadd.s32 1, %s15
    $region7: #{model_forward.1} parent=1 // loop_footer_branch
      %14 = sbr.rel target = $region3
    $region8: #{model_forward.1} parent=1 // loop_exit
      _
    %1745 = vsyncpa [#allocation3], 1
    %s1746 = scalar_lea.sflag [#allocation3], 1
    %1747 = vsyncpa %s1746, 1
    %1748 = vsyncpa [#allocation5], 1
    %s1749 = scalar_lea.sflag [#allocation5], 1
    %1750 = vsyncpa %s1749, 1

</llo_original>
